<compile_context>
chip_gen: v6e
topology: v6e:2x2x1
jax: 0.10.0
libtpu: 0.0.40
codegen_flags: <defaults>
</compile_context>

<pallas_src>
import jax
import jax.numpy as jnp
from jax.experimental import pallas as pl
from jax.experimental.pallas import tpu as pltpu

# ----------------- small synthetic config (consistent with the module) -------
BATCH = 2
IN_FDIM = 16          # spectrogram frequency bins
IN_TDIM = 24          # spectrogram time frames
PATCH = 8             # conv kernel size (16 in real AST)
FSTRIDE = 4           # frequency stride
TSTRIDE = 4           # time stride
EMBED = 32            # embedding dim (768 in base384)
HEADS = 4
DEPTH = 2             # number of transformer blocks (12 in base384)
MLP_HIDDEN = 4 * EMBED
LABEL_DIM = 10        # 527 in real AST
LABEL_PAD = ((LABEL_DIM + 127) // 128) * 128   # lane-dense head output
LN_EPS_BLOCK = 1e-6   # timm ViT LayerNorm eps
LN_EPS_HEAD = 1e-5    # nn.LayerNorm default eps in mlp_head

F_DIM = (IN_FDIM - PATCH) // FSTRIDE + 1
T_DIM = (IN_TDIM - PATCH) // TSTRIDE + 1
NUM_PATCHES = F_DIM * T_DIM
SEQ = NUM_PATCHES + 2            # + cls token + dist token
SEQ_PAD = ((SEQ + 7) // 8) * 8   # sublane-aligned sequence length
HEAD_DIM = EMBED // HEADS
KK = PATCH * PATCH
# one lane-dense slab row per small per-block parameter vector (8 rows total)
SLAB_W = ((max(3 * EMBED, MLP_HIDDEN, EMBED) + 127) // 128) * 128


# ----------------------------- in-kernel math helpers ------------------------
def _erf(x):
    # TODO(synk): exact lax.erf is not guaranteed to lower in Mosaic; use
    # Abramowitz & Stegun 7.1.26 (max abs err ~1.5e-7, below f32 noise).
    a1, a2, a3, a4, a5 = 0.254829592, -0.284496736, 1.421413741, -1.453152027, 1.061405429
    p = 0.3275911
    ax = jnp.abs(x)
    # EUP-routed approximate reciprocal: the divide leaves the VALU slot.
    t = pl.reciprocal(1.0 + p * ax, approx=True)
    poly = ((((a5 * t + a4) * t + a3) * t + a2) * t + a1) * t
    y = 1.0 - poly * jnp.exp(-ax * ax)
    return jnp.where(x >= 0, y, -y)


def _gelu(x):
    # nn.GELU (erf-based), matching timm 0.4.5 ViT MLP.
    return x * 0.5 * (1.0 + _erf(x * (1.0 / jnp.sqrt(2.0))))


def _layernorm(x, gamma, beta, eps):
    mu = jnp.mean(x, axis=-1, keepdims=True)
    var = jnp.mean((x - mu) ** 2, axis=-1, keepdims=True)
    return (x - mu) * jax.lax.rsqrt(var + eps) * gamma + beta


# ----------------------------- fused Pallas kernel ---------------------------
def _ast_fused_kernel(patches_ref, proj_w_ref, base_ref,
                      wqkv_ref, wproj_ref, wfc1_ref, wfc2_ref, slab_ref,
                      head_ln_ref, head_w_ref, head_b_ref,
                      out_ref, x_sc):
    l = pl.program_id(1)
    _, sp, d = x_sc.shape
    hd = d // HEADS
    hidden = wfc1_ref.shape[-1]

    # ---- step (b, 0): patch embedding + cls/dist/pos assembly ---------------
    @pl.when(l == 0)
    def _init():
        # One batched (SP, k*k)@(k*k, D) dot; `base` already holds
        # tok+pos (rows 0:2), pos+conv_bias (patch rows) and zeros (pad rows),
        # so a single full-width store assembles the whole slab.
        emb = jnp.dot(patches_ref[0], proj_w_ref[...],
                      preferred_element_type=jnp.float32)
        x_sc[...] = (emb + base_ref[...]).reshape(1, sp, d)

    # ---- transformer block `l` (pre-norm MHSA + MLP, eval mode) --------------
    wqkv = wqkv_ref[0]          # (D, 3D)   bf16, Q columns pre-scaled
    wproj = wproj_ref[0]        # (D, D)    bf16
    wfc1 = wfc1_ref[0]          # (D, H)    bf16
    wfc2 = wfc2_ref[0]          # (H, D)    bf16
    slab = slab_ref[0]          # (8, SLAB_W) f32:
    # rows: 0 ln1g, 1 ln1b, 2 bproj, 3 ln2g, 4 ln2b, 5 bfc2, 6 bqkv, 7 bfc1

    x2 = x_sc[0]                                         # (SP, D), f32

    xn = _layernorm(x2, slab[0:1, 0:d], slab[1:2, 0:d], LN_EPS_BLOCK)
    qkv = (jnp.dot(xn.astype(jnp.bfloat16), wqkv,
                   preferred_element_type=jnp.float32)
           + slab[6:7, 0:3 * d])                         # (SP, 3D)

    # Mask padded key rows (indices >= SEQ) so they never receive attention.
    key_valid = jax.lax.broadcasted_iota(jnp.int32, (1, sp), 1) < SEQ

    # TODO(synk): at real AST dims (HEADS=12, SEQ~514) convert this static
    # unroll to lax.fori_loop (bounds live ranges) and pre-permute the qkv
    # columns host-side so each head's slice starts on a 128-lane boundary.
    o_heads = []
    for h in range(HEADS):
        q = qkv[:, h * hd:(h + 1) * hd]                  # scale already folded
        k = qkv[:, d + h * hd:d + (h + 1) * hd]
        v = qkv[:, 2 * d + h * hd:2 * d + (h + 1) * hd]
        s = jnp.einsum('qc,kc->qk', q, k,
                       preferred_element_type=jnp.float32)   # (SP, SP)
        s = jnp.where(key_valid, s, jnp.float32(-1e30))
        s = s - jnp.max(s, axis=-1, keepdims=True)
        p = jnp.exp(s)
        p = p * pl.reciprocal(jnp.sum(p, axis=-1, keepdims=True), approx=True)
        o_heads.append(jnp.dot(p, v, preferred_element_type=jnp.float32))
    # single full-K projection dot instead of HEADS under-filled K=HEAD_DIM dots
    o_cat = jnp.concatenate(o_heads, axis=-1)            # (SP, D)
    proj = jnp.dot(o_cat.astype(jnp.bfloat16), wproj,
                   preferred_element_type=jnp.float32)
    x2 = x2 + proj + slab[2:3, 0:d]                      # residual + proj bias

    xn2 = _layernorm(x2, slab[3:4, 0:d], slab[4:5, 0:d], LN_EPS_BLOCK)
    hid = _gelu(jnp.dot(xn2.astype(jnp.bfloat16), wfc1,
                        preferred_element_type=jnp.float32)
                + slab[7:8, 0:hidden])
    x2 = x2 + jnp.dot(hid.astype(jnp.bfloat16), wfc2,
                      preferred_element_type=jnp.float32) + slab[5:6, 0:d]

    x_sc[...] = x2.reshape(1, sp, d)

    # ---- final depth step: token pooling + mlp_head (LayerNorm + Linear) ----
    @pl.when(l == pl.num_programs(1) - 1)
    def _head():
        pooled = (x2[0:1, :] + x2[1:2, :]) * 0.5         # (1, D)
        pn = _layernorm(pooled, head_ln_ref[0:1, :], head_ln_ref[1:2, :],
                        LN_EPS_HEAD)
        res = jnp.dot(pn, head_w_ref[...],
                      preferred_element_type=jnp.float32) + head_b_ref[...]
        out_ref[...] = res.reshape(1, 1, res.shape[-1])


# ----------------------------- glue (plain JAX) -------------------------------
def extract_patches_padded(x):
    # x: (B, 1, F, T), NCHW like the PyTorch conv input.
    # TODO(synk): the strided 16x16 conv is expressed as im2col patch
    # extraction here (plain-JAX glue) feeding an in-kernel matmul.
    b = x.shape[0]
    x2 = x[:, 0]                                                        # (B, F, T)
    rows = (jnp.arange(F_DIM) * FSTRIDE)[:, None] + jnp.arange(PATCH)   # (F_DIM, k)
    cols = (jnp.arange(T_DIM) * TSTRIDE)[:, None] + jnp.arange(PATCH)   # (T_DIM, k)
    p = x2[:, rows]                 # (B, F_DIM, k, T)
    p = p[:, :, :, cols]            # (B, F_DIM, k, T_DIM, k)
    p = jnp.transpose(p, (0, 1, 3, 2, 4))                               # (B, F_DIM, T_DIM, k, k)
    p = p.reshape(b, NUM_PATCHES, KK)
    # pad to SEQ_PAD rows: rows 0,1 (tokens) and rows >= SEQ are zero so the
    # in-kernel patch matmul contributes 0 there.
    out = jnp.zeros((b, SEQ_PAD, KK), jnp.float32)
    return out.at[:, 2:2 + NUM_PATCHES, :].set(p)


def init_params(key):
    keys = iter(jax.random.split(key, 64))

    def nrm(shape, std=0.02):
        return std * jax.random.normal(next(keys), shape, jnp.float32)

    params = {}
    # Conv2d(1, EMBED, kernel=(PATCH,PATCH), stride=(FSTRIDE,TSTRIDE)) weight, PyTorch layout.
    w_conv = nrm((EMBED, 1, PATCH, PATCH))
    params["proj_w"] = jnp.transpose(w_conv.reshape(EMBED, KK))          # (k*k, D)
    params["proj_b"] = nrm((1, EMBED))
    params["tok"] = jnp.concatenate([nrm((1, EMBED)), nrm((1, EMBED))], axis=0)  # [cls; dist]
    params["pos"] = nrm((SEQ, EMBED))

    scale = HEAD_DIM ** -0.5
    wqkv, wproj, wfc1, wfc2, slabs = [], [], [], [], []
    for _ in range(DEPTH):
        wq = nrm((EMBED, 3 * EMBED))
        wq = wq.at[:, :EMBED].multiply(scale)     # fold 1/sqrt(head_dim) into Q cols
        wqkv.append(wq)
        wproj.append(nrm((EMBED, EMBED)))
        wfc1.append(nrm((EMBED, MLP_HIDDEN)))
        wfc2.append(nrm((MLP_HIDDEN, EMBED)))

        bqkv = nrm((3 * EMBED,))
        bqkv = bqkv.at[:EMBED].multiply(scale)    # fold scale into Q bias too
        bfc1 = nrm((MLP_HIDDEN,))
        slab = jnp.zeros((8, SLAB_W), jnp.float32)
        slab = slab.at[0, :EMBED].set(1.0)                # ln1 gamma
        # row 1: ln1 beta = 0
        slab = slab.at[2, :EMBED].set(nrm((EMBED,)))      # attn proj bias
        slab = slab.at[3, :EMBED].set(1.0)                # ln2 gamma
        # row 4: ln2 beta = 0
        slab = slab.at[5, :EMBED].set(nrm((EMBED,)))      # mlp fc2 bias
        slab = slab.at[6, :3 * EMBED].set(bqkv)           # qkv bias (scaled Q part)
        slab = slab.at[7, :MLP_HIDDEN].set(bfc1)          # fc1 bias
        slabs.append(slab)

    # bf16 weight streaming; math stays f32 via preferred_element_type.
    params["wqkv"] = jnp.stack(wqkv).astype(jnp.bfloat16)    # (DEPTH, D, 3D)
    params["wproj"] = jnp.stack(wproj).astype(jnp.bfloat16)  # (DEPTH, D, D)
    params["wfc1"] = jnp.stack(wfc1).astype(jnp.bfloat16)    # (DEPTH, D, H)
    params["wfc2"] = jnp.stack(wfc2).astype(jnp.bfloat16)    # (DEPTH, H, D)
    params["slab"] = jnp.stack(slabs)                        # (DEPTH, 8, SLAB_W) f32

    params["head_ln"] = jnp.stack([jnp.ones((EMBED,), jnp.float32),
                                   jnp.zeros((EMBED,), jnp.float32)], axis=0)   # (2, D)
    # Lane-dense head: label dim zero-padded up to a multiple of 128.
    params["head_w"] = jnp.zeros((EMBED, LABEL_PAD), jnp.float32).at[
        :, :LABEL_DIM].set(nrm((EMBED, LABEL_DIM)))
    params["head_b"] = jnp.zeros((1, LABEL_PAD), jnp.float32).at[
        :, :LABEL_DIM].set(nrm((1, LABEL_DIM)))
    return params


def ast_forward(x, params):
    b = x.shape[0]
    patches = extract_patches_padded(x)                  # (B, SEQ_PAD, k*k)

    # base[r] = tok+pos for r in {0,1}; pos+conv_bias for patch rows; 0 for pad.
    base = jnp.zeros((SEQ_PAD, EMBED), jnp.float32)
    base = base.at[0:2, :].set(params["tok"] + params["pos"][0:2])
    base = base.at[2:SEQ, :].set(params["pos"][2:] + params["proj_b"])

    inputs = (patches, params["proj_w"], base,
              params["wqkv"], params["wproj"], params["wfc1"], params["wfc2"],
              params["slab"], params["head_ln"], params["head_w"], params["head_b"])

    def const_spec(a):                                    # resident whole array
        nd = a.ndim
        return pl.BlockSpec(a.shape, lambda bi, l, nd=nd: (0,) * nd)

    def depth_spec(a):                                    # one depth slice / step
        nd = a.ndim
        return pl.BlockSpec((1,) + tuple(a.shape[1:]),
                            lambda bi, l, nd=nd: (l,) + (0,) * (nd - 1))

    batch_spec = pl.BlockSpec((1, SEQ_PAD, KK), lambda bi, l: (bi, 0, 0))

    in_specs = [batch_spec,                # patches
                const_spec(inputs[1]),     # proj_w
                const_spec(inputs[2]),     # base
                depth_spec(inputs[3]),     # wqkv
                depth_spec(inputs[4]),     # wproj
                depth_spec(inputs[5]),     # wfc1
                depth_spec(inputs[6]),     # wfc2
                depth_spec(inputs[7]),     # slab
                const_spec(inputs[8]),     # head_ln
                const_spec(inputs[9]),     # head_w
                const_spec(inputs[10])]    # head_b

    # Explicit VMEM limit sized from the resident buffers (+ double buffers).
    def _nbytes(a):
        return int(a.size) * a.dtype.itemsize
    const_bytes = sum(_nbytes(a) for a in (inputs[1], inputs[2], inputs[8],
                                           inputs[9], inputs[10]))
    depth_step = sum(_nbytes(params[k]) // DEPTH
                     for k in ("wqkv", "wproj", "wfc1", "wfc2", "slab"))
    batch_step = _nbytes(patches) // b
    scratch_bytes = SEQ_PAD * EMBED * 4
    out_bytes = LABEL_PAD * 4
    est = const_bytes + 2 * (depth_step + batch_step + out_bytes) + scratch_bytes
    vmem_limit = int(min(64 << 20, max(32 << 20, 2 * est)))

    # NOTE: at real AST dims (D=768, H=3072, SEQ~514, DEPTH=12) on v7x (64 MiB
    # VMEM): keep bf16 weights, split the depth axis into attn/MLP phases (or
    # tile wfc1/wfc2 over the hidden dim) so only one phase's weights are
    # double-buffered.  On v6e, pl.Buffered(3) on wfc1/wfc2 can hide exposed
    # weight DMA (do NOT copy that to v7x).
    out = pl.pallas_call(
        _ast_fused_kernel,
        out_shape=jax.ShapeDtypeStruct((b, 1, LABEL_PAD), jnp.float32),
        grid=(b, DEPTH),
        in_specs=in_specs,
        out_specs=pl.BlockSpec((1, 1, LABEL_PAD), lambda bi, l: (bi, 0, 0)),
        scratch_shapes=[pltpu.VMEM((1, SEQ_PAD, EMBED), jnp.float32)],
        compiler_params=pltpu.CompilerParams(
            dimension_semantics=("parallel", "arbitrary"),
            vmem_limit_bytes=vmem_limit),
    )(*inputs)
    return out[:, 0, :LABEL_DIM]


if __name__ == "__main__":
    key = jax.random.PRNGKey(0)
    k_x, k_p = jax.random.split(key)
    x = jax.random.normal(k_x, (BATCH, 1, IN_FDIM, IN_TDIM), jnp.float32)
    params = init_params(k_p)

    out = jax.jit(ast_forward)(x, params)
    jax.block_until_ready(out)
    assert out.shape == (BATCH, LABEL_DIM), out.shape
    assert bool(jnp.all(jnp.isfinite(out)))
    print("KERNEL_OK")
</pallas_src>

<mosaic_0001>
module attributes {stable_mosaic.version = 11 : i64} {
  func.func @_ast_fused_kernel(%arg0: i32, %arg1: i32, %arg2: memref<1x24x64xf32, #tpu.memory_space<vmem>>, %arg3: memref<64x32xf32, #tpu.memory_space<vmem>>, %arg4: memref<24x32xf32, #tpu.memory_space<vmem>>, %arg5: memref<1x32x96xbf16, #tpu.memory_space<vmem>>, %arg6: memref<1x32x32xbf16, #tpu.memory_space<vmem>>, %arg7: memref<1x32x128xbf16, #tpu.memory_space<vmem>>, %arg8: memref<1x128x32xbf16, #tpu.memory_space<vmem>>, %arg9: memref<1x8x128xf32, #tpu.memory_space<vmem>>, %arg10: memref<2x32xf32, #tpu.memory_space<vmem>>, %arg11: memref<32x128xf32, #tpu.memory_space<vmem>>, %arg12: memref<1x128xf32, #tpu.memory_space<vmem>>, %arg13: memref<1x1x128xf32, #tpu.memory_space<vmem>>, %arg14: memref<1x24x32xf32, #tpu.memory_space<vmem>>) attributes {dimension_semantics = [#tpu.dimension_semantics<parallel>, #tpu.dimension_semantics<arbitrary>], iteration_bounds = array<i64: 2, 2>, scalar_prefetch = 0 : i64, scratch_operands = 1 : i64, tpu.core_type = #tpu.core_type<tc>, window_params = [{transform_indices = @transform_0, window_bounds = array<i64: 1, 24, 64>}, {pipeline_mode = #tpu.pipeline_mode<synchronous>, transform_indices = @transform_1, window_bounds = array<i64: 64, 32>}, {pipeline_mode = #tpu.pipeline_mode<synchronous>, transform_indices = @transform_2, window_bounds = array<i64: 24, 32>}, {transform_indices = @transform_3, window_bounds = array<i64: 1, 32, 96>}, {transform_indices = @transform_4, window_bounds = array<i64: 1, 32, 32>}, {transform_indices = @transform_5, window_bounds = array<i64: 1, 32, 128>}, {transform_indices = @transform_6, window_bounds = array<i64: 1, 128, 32>}, {transform_indices = @transform_7, window_bounds = array<i64: 1, 8, 128>}, {pipeline_mode = #tpu.pipeline_mode<synchronous>, transform_indices = @transform_8, window_bounds = array<i64: 2, 32>}, {pipeline_mode = #tpu.pipeline_mode<synchronous>, transform_indices = @transform_9, window_bounds = array<i64: 32, 128>}, {pipeline_mode = #tpu.pipeline_mode<synchronous>, transform_indices = @transform_10, window_bounds = array<i64: 1, 128>}, {transform_indices = @transform_11, window_bounds = array<i64: 1, 1, 128>}]} {
    %c0_i32 = arith.constant 0 : i32
    %0 = arith.cmpi eq, %arg1, %c0_i32 : i32
    %1 = arith.extui %0 : i1 to i32
    %c0_i32_0 = arith.constant 0 : i32
    %2 = arith.cmpi ne, %1, %c0_i32_0 : i32
    scf.if %2 {
      %c0_70 = arith.constant 0 : index
      %c0_71 = arith.constant 0 : index
      %c0_72 = arith.constant 0 : index
      %211 = vector.load %arg2[%c0_70, %c0_71, %c0_72] : memref<1x24x64xf32, #tpu.memory_space<vmem>>, vector<1x24x64xf32>
      %212 = vector.shape_cast %211 : vector<1x24x64xf32> to vector<24x64xf32>
      %c0_73 = arith.constant 0 : index
      %c0_74 = arith.constant 0 : index
      %213 = vector.load %arg3[%c0_73, %c0_74] : memref<64x32xf32, #tpu.memory_space<vmem>>, vector<64x32xf32>
      %cst_75 = arith.constant dense<0.000000e+00> : vector<24x32xf32>
      %214 = tpu.matmul %212, %213, %cst_75 {dimension_numbers = #tpu.dot_dimension_numbers<[1], [0], [0], [1], [0, 0, 1, 1], [], []>} : vector<24x64xf32>, vector<64x32xf32>, vector<24x32xf32> -> vector<24x32xf32>
      %c0_76 = arith.constant 0 : index
      %c0_77 = arith.constant 0 : index
      %215 = vector.load %arg4[%c0_76, %c0_77] : memref<24x32xf32, #tpu.memory_space<vmem>>, vector<24x32xf32>
      %216 = arith.addf %214, %215 : vector<24x32xf32>
      %217 = vector.shape_cast %216 : vector<24x32xf32> to vector<1x24x32xf32>
      %c0_78 = arith.constant 0 : index
      %c0_79 = arith.constant 0 : index
      %c0_80 = arith.constant 0 : index
      %218 = vector.load %arg14[%c0_78, %c0_79, %c0_80] : memref<1x24x32xf32, #tpu.memory_space<vmem>>, vector<1x24x32xf32>
      tpu.vector_store %arg14[%c0_78, %c0_79, %c0_80], %217 {strides = array<i32>} : memref<1x24x32xf32, #tpu.memory_space<vmem>>, vector<1x24x32xf32>,
    } else {
    }
    %c0 = arith.constant 0 : index
    %c0_1 = arith.constant 0 : index
    %c0_2 = arith.constant 0 : index
    %3 = vector.load %arg5[%c0, %c0_1, %c0_2] : memref<1x32x96xbf16, #tpu.memory_space<vmem>>, vector<1x32x96xbf16>
    %4 = vector.shape_cast %3 : vector<1x32x96xbf16> to vector<32x96xbf16>
    %c0_3 = arith.constant 0 : index
    %c0_4 = arith.constant 0 : index
    %c0_5 = arith.constant 0 : index
    %5 = vector.load %arg6[%c0_3, %c0_4, %c0_5] : memref<1x32x32xbf16, #tpu.memory_space<vmem>>, vector<1x32x32xbf16>
    %6 = vector.shape_cast %5 : vector<1x32x32xbf16> to vector<32x32xbf16>
    %c0_6 = arith.constant 0 : index
    %c0_7 = arith.constant 0 : index
    %c0_8 = arith.constant 0 : index
    %7 = vector.load %arg7[%c0_6, %c0_7, %c0_8] : memref<1x32x128xbf16, #tpu.memory_space<vmem>>, vector<1x32x128xbf16>
    %8 = vector.shape_cast %7 : vector<1x32x128xbf16> to vector<32x128xbf16>
    %c0_9 = arith.constant 0 : index
    %c0_10 = arith.constant 0 : index
    %c0_11 = arith.constant 0 : index
    %9 = vector.load %arg8[%c0_9, %c0_10, %c0_11] : memref<1x128x32xbf16, #tpu.memory_space<vmem>>, vector<1x128x32xbf16>
    %10 = vector.shape_cast %9 : vector<1x128x32xbf16> to vector<128x32xbf16>
    %c0_12 = arith.constant 0 : index
    %c0_13 = arith.constant 0 : index
    %c0_14 = arith.constant 0 : index
    %11 = vector.load %arg9[%c0_12, %c0_13, %c0_14] : memref<1x8x128xf32, #tpu.memory_space<vmem>>, vector<1x8x128xf32>
    %12 = vector.shape_cast %11 : vector<1x8x128xf32> to vector<8x128xf32>
    %c0_15 = arith.constant 0 : index
    %c0_16 = arith.constant 0 : index
    %c0_17 = arith.constant 0 : index
    %13 = vector.load %arg14[%c0_15, %c0_16, %c0_17] : memref<1x24x32xf32, #tpu.memory_space<vmem>>, vector<1x24x32xf32>
    %14 = vector.shape_cast %13 : vector<1x24x32xf32> to vector<24x32xf32>
    %15 = vector.extract_strided_slice %12 {offsets = [0, 0], sizes = [1, 32], strides = [1, 1]} : vector<8x128xf32> to vector<1x32xf32>
    %16 = vector.extract_strided_slice %12 {offsets = [1, 0], sizes = [1, 32], strides = [1, 1]} : vector<8x128xf32> to vector<1x32xf32>
    %cst = arith.constant dense<0.000000e+00> : vector<24xf32>
    %17 = vector.multi_reduction <add>, %14, %cst [1] : vector<24x32xf32> to vector<24xf32>
    %18 = vector.shape_cast %17 : vector<24xf32> to vector<24x1xf32>
    %cst_18 = arith.constant 3.200000e+01 : f32
    %19 = vector.broadcast %cst_18 : f32 to vector<24x1xf32>
    %20 = arith.divf %18, %19 : vector<24x1xf32>
    %21 = vector.broadcast %20 : vector<24x1xf32> to vector<24x32xf32>
    %22 = arith.subf %14, %21 : vector<24x32xf32>
    %23 = arith.mulf %22, %22 : vector<24x32xf32>
    %cst_19 = arith.constant dense<0.000000e+00> : vector<24xf32>
    %24 = vector.multi_reduction <add>, %23, %cst_19 [1] : vector<24x32xf32> to vector<24xf32>
    %25 = vector.shape_cast %24 : vector<24xf32> to vector<24x1xf32>
    %cst_20 = arith.constant 3.200000e+01 : f32
    %26 = vector.broadcast %cst_20 : f32 to vector<24x1xf32>
    %27 = arith.divf %25, %26 : vector<24x1xf32>
    %28 = vector.broadcast %20 : vector<24x1xf32> to vector<24x32xf32>
    %29 = arith.subf %14, %28 : vector<24x32xf32>
    %cst_21 = arith.constant 9.99999997E-7 : f32
    %30 = vector.broadcast %cst_21 : f32 to vector<24x1xf32>
    %31 = arith.addf %27, %30 : vector<24x1xf32>
    %32 = math.rsqrt %31 : vector<24x1xf32>
    %33 = vector.broadcast %32 : vector<24x1xf32> to vector<24x32xf32>
    %34 = arith.mulf %29, %33 : vector<24x32xf32>
    %35 = vector.broadcast %15 : vector<1x32xf32> to vector<24x32xf32>
    %36 = arith.mulf %34, %35 : vector<24x32xf32>
    %37 = vector.broadcast %16 : vector<1x32xf32> to vector<24x32xf32>
    %38 = arith.addf %36, %37 : vector<24x32xf32>
    %39 = arith.truncf %38 : vector<24x32xf32> to vector<24x32xbf16>
    %cst_22 = arith.constant dense<0.000000e+00> : vector<24x96xf32>
    %40 = tpu.matmul %39, %4, %cst_22 {dimension_numbers = #tpu.dot_dimension_numbers<[1], [0], [0], [1], [0, 0, 1, 1], [], []>} : vector<24x32xbf16>, vector<32x96xbf16>, vector<24x96xf32> -> vector<24x96xf32>
    %41 = vector.extract_strided_slice %12 {offsets = [6, 0], sizes = [1, 96], strides = [1, 1]} : vector<8x128xf32> to vector<1x96xf32>
    %42 = vector.broadcast %41 : vector<1x96xf32> to vector<24x96xf32>
    %43 = arith.addf %40, %42 : vector<24x96xf32>
    %44 = tpu.iota {dimensions = array<i32: 1>} : vector<1x24xi32>
    %c17_i32 = arith.constant 17 : i32
    %45 = vector.broadcast %c17_i32 : i32 to vector<1x24xi32>
    %46 = arith.cmpi slt, %44, %45 : vector<1x24xi32>
    %47 = vector.extract_strided_slice %43 {offsets = [0, 0], sizes = [24, 8], strides = [1, 1]} : vector<24x96xf32> to vector<24x8xf32>
    %48 = vector.extract_strided_slice %43 {offsets = [0, 32], sizes = [24, 8], strides = [1, 1]} : vector<24x96xf32> to vector<24x8xf32>
    %49 = vector.extract_strided_slice %43 {offsets = [0, 64], sizes = [24, 8], strides = [1, 1]} : vector<24x96xf32> to vector<24x8xf32>
    "tpu.trace_start"() <{level = 10 : i32, message = "qc,kc->qk"}> : () -> ()
    %cst_23 = arith.constant dense<0.000000e+00> : vector<24x24xf32>
    %50 = tpu.matmul %47, %48, %cst_23 {dimension_numbers = #tpu.dot_dimension_numbers<[1], [1], [0], [0], [0, 0, 1, 0], [], []>} : vector<24x8xf32>, vector<24x8xf32>, vector<24x24xf32> -> vector<24x24xf32>
    %cst_24 = arith.constant -1.000000e+30 : f32
    "tpu.trace_stop"() : () -> ()
    %51 = vector.shape_cast %46 : vector<1x24xi1> to vector<1x24xi1>
    %52 = vector.broadcast %51 : vector<1x24xi1> to vector<24x24xi1>
    %53 = vector.broadcast %cst_24 : f32 to vector<24x24xf32>
    %54 = arith.select %52, %50, %53 : vector<24x24xi1>, vector<24x24xf32>
    %cst_25 = arith.constant dense<0xFF800000> : vector<24xf32>
    %55 = vector.multi_reduction <maximumf>, %54, %cst_25 [1] : vector<24x24xf32> to vector<24xf32>
    %56 = vector.shape_cast %55 : vector<24xf32> to vector<24x1xf32>
    %57 = vector.broadcast %56 : vector<24x1xf32> to vector<24x24xf32>
    %58 = arith.subf %54, %57 : vector<24x24xf32>
    %59 = math.exp %58 : vector<24x24xf32>
    %cst_26 = arith.constant dense<0.000000e+00> : vector<24xf32>
    %60 = vector.multi_reduction <add>, %59, %cst_26 [1] : vector<24x24xf32> to vector<24xf32>
    %61 = vector.shape_cast %60 : vector<24xf32> to vector<24x1xf32>
    %62 = tpu.reciprocal %61 {approx = true} : vector<24x1xf32> -> vector<24x1xf32>
    %63 = vector.broadcast %62 : vector<24x1xf32> to vector<24x24xf32>
    %64 = arith.mulf %59, %63 : vector<24x24xf32>
    %cst_27 = arith.constant dense<0.000000e+00> : vector<24x8xf32>
    %65 = tpu.matmul %64, %49, %cst_27 {dimension_numbers = #tpu.dot_dimension_numbers<[1], [0], [0], [1], [0, 0, 1, 1], [], []>} : vector<24x24xf32>, vector<24x8xf32>, vector<24x8xf32> -> vector<24x8xf32>
    %66 = vector.extract_strided_slice %43 {offsets = [0, 8], sizes = [24, 8], strides = [1, 1]} : vector<24x96xf32> to vector<24x8xf32>
    %67 = vector.extract_strided_slice %43 {offsets = [0, 40], sizes = [24, 8], strides = [1, 1]} : vector<24x96xf32> to vector<24x8xf32>
    %68 = vector.extract_strided_slice %43 {offsets = [0, 72], sizes = [24, 8], strides = [1, 1]} : vector<24x96xf32> to vector<24x8xf32>
    "tpu.trace_start"() <{level = 10 : i32, message = "qc,kc->qk"}> : () -> ()
    %cst_28 = arith.constant dense<0.000000e+00> : vector<24x24xf32>
    %69 = tpu.matmul %66, %67, %cst_28 {dimension_numbers = #tpu.dot_dimension_numbers<[1], [1], [0], [0], [0, 0, 1, 0], [], []>} : vector<24x8xf32>, vector<24x8xf32>, vector<24x24xf32> -> vector<24x24xf32>
    %cst_29 = arith.constant -1.000000e+30 : f32
    "tpu.trace_stop"() : () -> ()
    %70 = vector.shape_cast %46 : vector<1x24xi1> to vector<1x24xi1>
    %71 = vector.broadcast %70 : vector<1x24xi1> to vector<24x24xi1>
    %72 = vector.broadcast %cst_29 : f32 to vector<24x24xf32>
    %73 = arith.select %71, %69, %72 : vector<24x24xi1>, vector<24x24xf32>
    %cst_30 = arith.constant dense<0xFF800000> : vector<24xf32>
    %74 = vector.multi_reduction <maximumf>, %73, %cst_30 [1] : vector<24x24xf32> to vector<24xf32>
    %75 = vector.shape_cast %74 : vector<24xf32> to vector<24x1xf32>
    %76 = vector.broadcast %75 : vector<24x1xf32> to vector<24x24xf32>
    %77 = arith.subf %73, %76 : vector<24x24xf32>
    %78 = math.exp %77 : vector<24x24xf32>
    %cst_31 = arith.constant dense<0.000000e+00> : vector<24xf32>
    %79 = vector.multi_reduction <add>, %78, %cst_31 [1] : vector<24x24xf32> to vector<24xf32>
    %80 = vector.shape_cast %79 : vector<24xf32> to vector<24x1xf32>
    %81 = tpu.reciprocal %80 {approx = true} : vector<24x1xf32> -> vector<24x1xf32>
    %82 = vector.broadcast %81 : vector<24x1xf32> to vector<24x24xf32>
    %83 = arith.mulf %78, %82 : vector<24x24xf32>
    %cst_32 = arith.constant dense<0.000000e+00> : vector<24x8xf32>
    %84 = tpu.matmul %83, %68, %cst_32 {dimension_numbers = #tpu.dot_dimension_numbers<[1], [0], [0], [1], [0, 0, 1, 1], [], []>} : vector<24x24xf32>, vector<24x8xf32>, vector<24x8xf32> -> vector<24x8xf32>
    %85 = vector.extract_strided_slice %43 {offsets = [0, 16], sizes = [24, 8], strides = [1, 1]} : vector<24x96xf32> to vector<24x8xf32>
    %86 = vector.extract_strided_slice %43 {offsets = [0, 48], sizes = [24, 8], strides = [1, 1]} : vector<24x96xf32> to vector<24x8xf32>
    %87 = vector.extract_strided_slice %43 {offsets = [0, 80], sizes = [24, 8], strides = [1, 1]} : vector<24x96xf32> to vector<24x8xf32>
    "tpu.trace_start"() <{level = 10 : i32, message = "qc,kc->qk"}> : () -> ()
    %cst_33 = arith.constant dense<0.000000e+00> : vector<24x24xf32>
    %88 = tpu.matmul %85, %86, %cst_33 {dimension_numbers = #tpu.dot_dimension_numbers<[1], [1], [0], [0], [0, 0, 1, 0], [], []>} : vector<24x8xf32>, vector<24x8xf32>, vector<24x24xf32> -> vector<24x24xf32>
    %cst_34 = arith.constant -1.000000e+30 : f32
    "tpu.trace_stop"() : () -> ()
    %89 = vector.shape_cast %46 : vector<1x24xi1> to vector<1x24xi1>
    %90 = vector.broadcast %89 : vector<1x24xi1> to vector<24x24xi1>
    %91 = vector.broadcast %cst_34 : f32 to vector<24x24xf32>
    %92 = arith.select %90, %88, %91 : vector<24x24xi1>, vector<24x24xf32>
    %cst_35 = arith.constant dense<0xFF800000> : vector<24xf32>
    %93 = vector.multi_reduction <maximumf>, %92, %cst_35 [1] : vector<24x24xf32> to vector<24xf32>
    %94 = vector.shape_cast %93 : vector<24xf32> to vector<24x1xf32>
    %95 = vector.broadcast %94 : vector<24x1xf32> to vector<24x24xf32>
    %96 = arith.subf %92, %95 : vector<24x24xf32>
    %97 = math.exp %96 : vector<24x24xf32>
    %cst_36 = arith.constant dense<0.000000e+00> : vector<24xf32>
    %98 = vector.multi_reduction <add>, %97, %cst_36 [1] : vector<24x24xf32> to vector<24xf32>
    %99 = vector.shape_cast %98 : vector<24xf32> to vector<24x1xf32>
    %100 = tpu.reciprocal %99 {approx = true} : vector<24x1xf32> -> vector<24x1xf32>
    %101 = vector.broadcast %100 : vector<24x1xf32> to vector<24x24xf32>
    %102 = arith.mulf %97, %101 : vector<24x24xf32>
    %cst_37 = arith.constant dense<0.000000e+00> : vector<24x8xf32>
    %103 = tpu.matmul %102, %87, %cst_37 {dimension_numbers = #tpu.dot_dimension_numbers<[1], [0], [0], [1], [0, 0, 1, 1], [], []>} : vector<24x24xf32>, vector<24x8xf32>, vector<24x8xf32> -> vector<24x8xf32>
    %104 = vector.extract_strided_slice %43 {offsets = [0, 24], sizes = [24, 8], strides = [1, 1]} : vector<24x96xf32> to vector<24x8xf32>
    %105 = vector.extract_strided_slice %43 {offsets = [0, 56], sizes = [24, 8], strides = [1, 1]} : vector<24x96xf32> to vector<24x8xf32>
    %106 = vector.extract_strided_slice %43 {offsets = [0, 88], sizes = [24, 8], strides = [1, 1]} : vector<24x96xf32> to vector<24x8xf32>
    "tpu.trace_start"() <{level = 10 : i32, message = "qc,kc->qk"}> : () -> ()
    %cst_38 = arith.constant dense<0.000000e+00> : vector<24x24xf32>
    %107 = tpu.matmul %104, %105, %cst_38 {dimension_numbers = #tpu.dot_dimension_numbers<[1], [1], [0], [0], [0, 0, 1, 0], [], []>} : vector<24x8xf32>, vector<24x8xf32>, vector<24x24xf32> -> vector<24x24xf32>
    %cst_39 = arith.constant -1.000000e+30 : f32
    "tpu.trace_stop"() : () -> ()
    %108 = vector.shape_cast %46 : vector<1x24xi1> to vector<1x24xi1>
    %109 = vector.broadcast %108 : vector<1x24xi1> to vector<24x24xi1>
    %110 = vector.broadcast %cst_39 : f32 to vector<24x24xf32>
    %111 = arith.select %109, %107, %110 : vector<24x24xi1>, vector<24x24xf32>
    %cst_40 = arith.constant dense<0xFF800000> : vector<24xf32>
    %112 = vector.multi_reduction <maximumf>, %111, %cst_40 [1] : vector<24x24xf32> to vector<24xf32>
    %113 = vector.shape_cast %112 : vector<24xf32> to vector<24x1xf32>
    %114 = vector.broadcast %113 : vector<24x1xf32> to vector<24x24xf32>
    %115 = arith.subf %111, %114 : vector<24x24xf32>
    %116 = math.exp %115 : vector<24x24xf32>
    %cst_41 = arith.constant dense<0.000000e+00> : vector<24xf32>
    %117 = vector.multi_reduction <add>, %116, %cst_41 [1] : vector<24x24xf32> to vector<24xf32>
    %118 = vector.shape_cast %117 : vector<24xf32> to vector<24x1xf32>
    %119 = tpu.reciprocal %118 {approx = true} : vector<24x1xf32> -> vector<24x1xf32>
    %120 = vector.broadcast %119 : vector<24x1xf32> to vector<24x24xf32>
    %121 = arith.mulf %116, %120 : vector<24x24xf32>
    %cst_42 = arith.constant dense<0.000000e+00> : vector<24x8xf32>
    %122 = tpu.matmul %121, %106, %cst_42 {dimension_numbers = #tpu.dot_dimension_numbers<[1], [0], [0], [1], [0, 0, 1, 1], [], []>} : vector<24x24xf32>, vector<24x8xf32>, vector<24x8xf32> -> vector<24x8xf32>
    %123 = tpu.concatenate %65, %84, %103, %122 in 1 : vector<24x8xf32>, vector<24x8xf32>, vector<24x8xf32>, vector<24x8xf32> -> vector<24x32xf32>
    %124 = arith.truncf %123 : vector<24x32xf32> to vector<24x32xbf16>
    %cst_43 = arith.constant dense<0.000000e+00> : vector<24x32xf32>
    %125 = tpu.matmul %124, %6, %cst_43 {dimension_numbers = #tpu.dot_dimension_numbers<[1], [0], [0], [1], [0, 0, 1, 1], [], []>} : vector<24x32xbf16>, vector<32x32xbf16>, vector<24x32xf32> -> vector<24x32xf32>
    %126 = arith.addf %14, %125 : vector<24x32xf32>
    %127 = vector.extract_strided_slice %12 {offsets = [2, 0], sizes = [1, 32], strides = [1, 1]} : vector<8x128xf32> to vector<1x32xf32>
    %128 = vector.broadcast %127 : vector<1x32xf32> to vector<24x32xf32>
    %129 = arith.addf %126, %128 : vector<24x32xf32>
    %130 = vector.extract_strided_slice %12 {offsets = [3, 0], sizes = [1, 32], strides = [1, 1]} : vector<8x128xf32> to vector<1x32xf32>
    %131 = vector.extract_strided_slice %12 {offsets = [4, 0], sizes = [1, 32], strides = [1, 1]} : vector<8x128xf32> to vector<1x32xf32>
    %cst_44 = arith.constant dense<0.000000e+00> : vector<24xf32>
    %132 = vector.multi_reduction <add>, %129, %cst_44 [1] : vector<24x32xf32> to vector<24xf32>
    %133 = vector.shape_cast %132 : vector<24xf32> to vector<24x1xf32>
    %cst_45 = arith.constant 3.200000e+01 : f32
    %134 = vector.broadcast %cst_45 : f32 to vector<24x1xf32>
    %135 = arith.divf %133, %134 : vector<24x1xf32>
    %136 = vector.broadcast %135 : vector<24x1xf32> to vector<24x32xf32>
    %137 = arith.subf %129, %136 : vector<24x32xf32>
    %138 = arith.mulf %137, %137 : vector<24x32xf32>
    %cst_46 = arith.constant dense<0.000000e+00> : vector<24xf32>
    %139 = vector.multi_reduction <add>, %138, %cst_46 [1] : vector<24x32xf32> to vector<24xf32>
    %140 = vector.shape_cast %139 : vector<24xf32> to vector<24x1xf32>
    %cst_47 = arith.constant 3.200000e+01 : f32
    %141 = vector.broadcast %cst_47 : f32 to vector<24x1xf32>
    %142 = arith.divf %140, %141 : vector<24x1xf32>
    %143 = vector.broadcast %135 : vector<24x1xf32> to vector<24x32xf32>
    %144 = arith.subf %129, %143 : vector<24x32xf32>
    %cst_48 = arith.constant 9.99999997E-7 : f32
    %145 = vector.broadcast %cst_48 : f32 to vector<24x1xf32>
    %146 = arith.addf %142, %145 : vector<24x1xf32>
    %147 = math.rsqrt %146 : vector<24x1xf32>
    %148 = vector.broadcast %147 : vector<24x1xf32> to vector<24x32xf32>
    %149 = arith.mulf %144, %148 : vector<24x32xf32>
    %150 = vector.broadcast %130 : vector<1x32xf32> to vector<24x32xf32>
    %151 = arith.mulf %149, %150 : vector<24x32xf32>
    %152 = vector.broadcast %131 : vector<1x32xf32> to vector<24x32xf32>
    %153 = arith.addf %151, %152 : vector<24x32xf32>
    %154 = arith.truncf %153 : vector<24x32xf32> to vector<24x32xbf16>
    %cst_49 = arith.constant dense<0.000000e+00> : vector<24x128xf32>
    %155 = tpu.matmul %154, %8, %cst_49 {dimension_numbers = #tpu.dot_dimension_numbers<[1], [0], [0], [1], [0, 0, 1, 1], [], []>} : vector<24x32xbf16>, vector<32x128xbf16>, vector<24x128xf32> -> vector<24x128xf32>
    %156 = vector.extract_strided_slice %12 {offsets = [7, 0], sizes = [1, 128], strides = [1, 1]} : vector<8x128xf32> to vector<1x128xf32>
    %157 = vector.broadcast %156 : vector<1x128xf32> to vector<24x128xf32>
    %158 = arith.addf %155, %157 : vector<24x128xf32>
    %cst_50 = arith.constant 5.000000e-01 : f32
    %159 = vector.broadcast %cst_50 : f32 to vector<24x128xf32>
    %160 = arith.mulf %158, %159 : vector<24x128xf32>
    %cst_51 = arith.constant 2.000000e+00 : f32
    %161 = math.sqrt %cst_51 : f32
    %cst_52 = arith.constant 1.000000e+00 : f32
    %162 = arith.divf %cst_52, %161 : f32
    %163 = vector.broadcast %162 : f32 to vector<24x128xf32>
    %164 = arith.mulf %158, %163 : vector<24x128xf32>
    %165 = math.absf %164 : vector<24x128xf32>
    %cst_53 = arith.constant 0.327591091 : f32
    %166 = vector.broadcast %cst_53 : f32 to vector<24x128xf32>
    %167 = arith.mulf %166, %165 : vector<24x128xf32>
    %cst_54 = arith.constant 1.000000e+00 : f32
    %168 = vector.broadcast %cst_54 : f32 to vector<24x128xf32>
    %169 = arith.addf %168, %167 : vector<24x128xf32>
    %170 = tpu.reciprocal %169 {approx = true} : vector<24x128xf32> -> vector<24x128xf32>
    %cst_55 = arith.constant 1.06140542 : f32
    %171 = vector.broadcast %cst_55 : f32 to vector<24x128xf32>
    %172 = arith.mulf %171, %170 : vector<24x128xf32>
    %cst_56 = arith.constant -1.45315206 : f32
    %173 = vector.broadcast %cst_56 : f32 to vector<24x128xf32>
    %174 = arith.addf %172, %173 : vector<24x128xf32>
    %175 = arith.mulf %174, %170 : vector<24x128xf32>
    %cst_57 = arith.constant 1.42141378 : f32
    %176 = vector.broadcast %cst_57 : f32 to vector<24x128xf32>
    %177 = arith.addf %175, %176 : vector<24x128xf32>
    %178 = arith.mulf %177, %170 : vector<24x128xf32>
    %cst_58 = arith.constant -0.284496725 : f32
    %179 = vector.broadcast %cst_58 : f32 to vector<24x128xf32>
    %180 = arith.addf %178, %179 : vector<24x128xf32>
    %181 = arith.mulf %180, %170 : vector<24x128xf32>
    %cst_59 = arith.constant 0.254829586 : f32
    %182 = vector.broadcast %cst_59 : f32 to vector<24x128xf32>
    %183 = arith.addf %181, %182 : vector<24x128xf32>
    %184 = arith.mulf %183, %170 : vector<24x128xf32>
    %cst_60 = arith.constant 0.000000e+00 : f32
    %185 = vector.broadcast %cst_60 : f32 to vector<24x128xf32>
    %186 = arith.subf %185, %165 : vector<24x128xf32>
    %187 = arith.mulf %186, %165 : vector<24x128xf32>
    %188 = math.exp %187 : vector<24x128xf32>
    %189 = arith.mulf %184, %188 : vector<24x128xf32>
    %cst_61 = arith.constant 1.000000e+00 : f32
    %190 = vector.broadcast %cst_61 : f32 to vector<24x128xf32>
    %191 = arith.subf %190, %189 : vector<24x128xf32>
    %cst_62 = arith.constant 0.000000e+00 : f32
    %192 = vector.broadcast %cst_62 : f32 to vector<24x128xf32>
    %193 = arith.cmpf oge, %164, %192 : vector<24x128xf32>
    %cst_63 = arith.constant 0.000000e+00 : f32
    %194 = vector.broadcast %cst_63 : f32 to vector<24x128xf32>
    %195 = arith.subf %194, %191 : vector<24x128xf32>
    %196 = arith.select %193, %191, %195 : vector<24x128xi1>, vector<24x128xf32>
    %cst_64 = arith.constant 1.000000e+00 : f32
    %197 = vector.broadcast %cst_64 : f32 to vector<24x128xf32>
    %198 = arith.addf %197, %196 : vector<24x128xf32>
    %199 = arith.mulf %160, %198 : vector<24x128xf32>
    %200 = arith.truncf %199 : vector<24x128xf32> to vector<24x128xbf16>
    %cst_65 = arith.constant dense<0.000000e+00> : vector<24x32xf32>
    %201 = tpu.matmul %200, %10, %cst_65 {dimension_numbers = #tpu.dot_dimension_numbers<[1], [0], [0], [1], [0, 0, 1, 1], [], []>} : vector<24x128xbf16>, vector<128x32xbf16>, vector<24x32xf32> -> vector<24x32xf32>
    %202 = arith.addf %129, %201 : vector<24x32xf32>
    %203 = vector.extract_strided_slice %12 {offsets = [5, 0], sizes = [1, 32], strides = [1, 1]} : vector<8x128xf32> to vector<1x32xf32>
    %204 = vector.broadcast %203 : vector<1x32xf32> to vector<24x32xf32>
    %205 = arith.addf %202, %204 : vector<24x32xf32>
    %206 = vector.shape_cast %205 : vector<24x32xf32> to vector<1x24x32xf32>
    %c0_66 = arith.constant 0 : index
    %c0_67 = arith.constant 0 : index
    %c0_68 = arith.constant 0 : index
    %207 = vector.load %arg14[%c0_66, %c0_67, %c0_68] : memref<1x24x32xf32, #tpu.memory_space<vmem>>, vector<1x24x32xf32>
    tpu.vector_store %arg14[%c0_66, %c0_67, %c0_68], %206 {strides = array<i32>} : memref<1x24x32xf32, #tpu.memory_space<vmem>>, vector<1x24x32xf32>,
    %c1_i32 = arith.constant 1 : i32
    %208 = arith.cmpi eq, %arg1, %c1_i32 : i32
    %209 = arith.extui %208 : i1 to i32
    %c0_i32_69 = arith.constant 0 : i32
    %210 = arith.cmpi ne, %209, %c0_i32_69 : i32
    scf.if %210 {
      %211 = vector.extract_strided_slice %205 {offsets = [0, 0], sizes = [1, 32], strides = [1, 1]} : vector<24x32xf32> to vector<1x32xf32>
      %212 = vector.extract_strided_slice %205 {offsets = [1, 0], sizes = [1, 32], strides = [1, 1]} : vector<24x32xf32> to vector<1x32xf32>
      %213 = arith.addf %211, %212 : vector<1x32xf32>
      %cst_70 = arith.constant 5.000000e-01 : f32
      %214 = vector.broadcast %cst_70 : f32 to vector<1x32xf32>
      %215 = arith.mulf %213, %214 : vector<1x32xf32>
      %c0_71 = arith.constant 0 : index
      %c0_72 = arith.constant 0 : index
      %216 = vector.load %arg10[%c0_71, %c0_72] : memref<2x32xf32, #tpu.memory_space<vmem>>, vector<1x32xf32>
      %c1 = arith.constant 1 : index
      %c0_73 = arith.constant 0 : index
      %217 = vector.load %arg10[%c1, %c0_73] : memref<2x32xf32, #tpu.memory_space<vmem>>, vector<1x32xf32>
      %cst_74 = arith.constant dense<0.000000e+00> : vector<1xf32>
      %218 = vector.multi_reduction <add>, %215, %cst_74 [1] : vector<1x32xf32> to vector<1xf32>
      %219 = vector.shape_cast %218 : vector<1xf32> to vector<1x1xf32>
      %cst_75 = arith.constant 3.200000e+01 : f32
      %220 = vector.broadcast %cst_75 : f32 to vector<1x1xf32>
      %221 = arith.divf %219, %220 : vector<1x1xf32>
      %222 = vector.broadcast %221 : vector<1x1xf32> to vector<1x32xf32>
      %223 = arith.subf %215, %222 : vector<1x32xf32>
      %224 = arith.mulf %223, %223 : vector<1x32xf32>
      %cst_76 = arith.constant dense<0.000000e+00> : vector<1xf32>
      %225 = vector.multi_reduction <add>, %224, %cst_76 [1] : vector<1x32xf32> to vector<1xf32>
      %226 = vector.shape_cast %225 : vector<1xf32> to vector<1x1xf32>
      %cst_77 = arith.constant 3.200000e+01 : f32
      %227 = vector.broadcast %cst_77 : f32 to vector<1x1xf32>
      %228 = arith.divf %226, %227 : vector<1x1xf32>
      %229 = vector.broadcast %221 : vector<1x1xf32> to vector<1x32xf32>
      %230 = arith.subf %215, %229 : vector<1x32xf32>
      %cst_78 = arith.constant 9.99999974E-6 : f32
      %231 = vector.broadcast %cst_78 : f32 to vector<1x1xf32>
      %232 = arith.addf %228, %231 : vector<1x1xf32>
      %233 = math.rsqrt %232 : vector<1x1xf32>
      %234 = vector.broadcast %233 : vector<1x1xf32> to vector<1x32xf32>
      %235 = arith.mulf %230, %234 : vector<1x32xf32>
      %236 = arith.mulf %235, %216 : vector<1x32xf32>
      %237 = arith.addf %236, %217 : vector<1x32xf32>
      %c0_79 = arith.constant 0 : index
      %c0_80 = arith.constant 0 : index
      %238 = vector.load %arg11[%c0_79, %c0_80] : memref<32x128xf32, #tpu.memory_space<vmem>>, vector<32x128xf32>
      %cst_81 = arith.constant dense<0.000000e+00> : vector<1x128xf32>
      %239 = tpu.matmul %237, %238, %cst_81 {dimension_numbers = #tpu.dot_dimension_numbers<[1], [0], [0], [1], [0, 0, 1, 1], [], []>} : vector<1x32xf32>, vector<32x128xf32>, vector<1x128xf32> -> vector<1x128xf32>
      %c0_82 = arith.constant 0 : index
      %c0_83 = arith.constant 0 : index
      %240 = vector.load %arg12[%c0_82, %c0_83] : memref<1x128xf32, #tpu.memory_space<vmem>>, vector<1x128xf32>
      %241 = arith.addf %239, %240 : vector<1x128xf32>
      %242 = vector.shape_cast %241 : vector<1x128xf32> to vector<1x1x128xf32>
      %c0_84 = arith.constant 0 : index
      %c0_85 = arith.constant 0 : index
      %c0_86 = arith.constant 0 : index
      %243 = vector.load %arg13[%c0_84, %c0_85, %c0_86] : memref<1x1x128xf32, #tpu.memory_space<vmem>>, vector<1x1x128xf32>
      tpu.vector_store %arg13[%c0_84, %c0_85, %c0_86], %242 {strides = array<i32>} : memref<1x1x128xf32, #tpu.memory_space<vmem>>, vector<1x1x128xf32>,
    } else {
    }
    return
  }
  func.func @transform_0(%arg0: i32, %arg1: i32) -> (i32, i32, i32) {
    %c0_i32 = arith.constant 0 : i32
    %c0_i32_0 = arith.constant 0 : i32
    %c0_i32_1 = arith.constant 0 : i32
    return %arg0, %c0_i32, %c0_i32_0 : i32, i32, i32
  }
  func.func @transform_1(%arg0: i32, %arg1: i32) -> (i32, i32) {
    %c0_i32 = arith.constant 0 : i32
    %c0_i32_0 = arith.constant 0 : i32
    %c0_i32_1 = arith.constant 0 : i32
    return %c0_i32, %c0_i32_0 : i32, i32
  }
  func.func @transform_2(%arg0: i32, %arg1: i32) -> (i32, i32) {
    %c0_i32 = arith.constant 0 : i32
    %c0_i32_0 = arith.constant 0 : i32
    %c0_i32_1 = arith.constant 0 : i32
    return %c0_i32, %c0_i32_0 : i32, i32
  }
  func.func @transform_3(%arg0: i32, %arg1: i32) -> (i32, i32, i32) {
    %c0_i32 = arith.constant 0 : i32
    %c0_i32_0 = arith.constant 0 : i32
    %c0_i32_1 = arith.constant 0 : i32
    return %arg1, %c0_i32, %c0_i32_0 : i32, i32, i32
  }
  func.func @transform_4(%arg0: i32, %arg1: i32) -> (i32, i32, i32) {
    %c0_i32 = arith.constant 0 : i32
    %c0_i32_0 = arith.constant 0 : i32
    %c0_i32_1 = arith.constant 0 : i32
    return %arg1, %c0_i32, %c0_i32_0 : i32, i32, i32
  }
  func.func @transform_5(%arg0: i32, %arg1: i32) -> (i32, i32, i32) {
    %c0_i32 = arith.constant 0 : i32
    %c0_i32_0 = arith.constant 0 : i32
    %c0_i32_1 = arith.constant 0 : i32
    return %arg1, %c0_i32, %c0_i32_0 : i32, i32, i32
  }
  func.func @transform_6(%arg0: i32, %arg1: i32) -> (i32, i32, i32) {
    %c0_i32 = arith.constant 0 : i32
    %c0_i32_0 = arith.constant 0 : i32
    %c0_i32_1 = arith.constant 0 : i32
    return %arg1, %c0_i32, %c0_i32_0 : i32, i32, i32
  }
  func.func @transform_7(%arg0: i32, %arg1: i32) -> (i32, i32, i32) {
    %c0_i32 = arith.constant 0 : i32
    %c0_i32_0 = arith.constant 0 : i32
    %c0_i32_1 = arith.constant 0 : i32
    return %arg1, %c0_i32, %c0_i32_0 : i32, i32, i32
  }
  func.func @transform_8(%arg0: i32, %arg1: i32) -> (i32, i32) {
    %c0_i32 = arith.constant 0 : i32
    %c0_i32_0 = arith.constant 0 : i32
    %c0_i32_1 = arith.constant 0 : i32
    return %c0_i32, %c0_i32_0 : i32, i32
  }
  func.func @transform_9(%arg0: i32, %arg1: i32) -> (i32, i32) {
    %c0_i32 = arith.constant 0 : i32
    %c0_i32_0 = arith.constant 0 : i32
    %c0_i32_1 = arith.constant 0 : i32
    return %c0_i32, %c0_i32_0 : i32, i32
  }
  func.func @transform_10(%arg0: i32, %arg1: i32) -> (i32, i32) {
    %c0_i32 = arith.constant 0 : i32
    %c0_i32_0 = arith.constant 0 : i32
    %c0_i32_1 = arith.constant 0 : i32
    return %c0_i32, %c0_i32_0 : i32, i32
  }
  func.func @transform_11(%arg0: i32, %arg1: i32) -> (i32, i32, i32) {
    %c0_i32 = arith.constant 0 : i32
    %c0_i32_0 = arith.constant 0 : i32
    %c0_i32_1 = arith.constant 0 : i32
    return %arg0, %c0_i32, %c0_i32_0 : i32, i32, i32
  }
}

</mosaic_0001>

<llo_original>
// kernel: ast_forward.1
$region0: #{ast_forward.1}
  #allocation0 [shape = 'u32[]', space=smem, size = 0x4, offset = 0x4, fixed_abs, tag = 'smem constant byte address 0x4 - core index']
  #allocation1 [shape = 'u32[144,128]{1,0:T(1,128)}', space=vmem, size = 0x12000, scoped, tag = 'internal scratch']
  #allocation2 [shape = 'f32[1,24,32]{2,1,0:T(8,128)}', space=vmem, size = 0x3000, scoped, tag = 'scratch operand']
  %s0 = inlined_call_operand.vmem [shape: f32[2,24,64], index: 0, kind: input, shape index: {}]
  %s1 = inlined_call_operand.vmem [shape: f32[64,32], index: 1, kind: input, shape index: {}]
  %s2 = inlined_call_operand.vmem [shape: f32[24,32], index: 2, kind: input, shape index: {}]
  %s3 = inlined_call_operand.vmem [shape: bf16[2,32,96], index: 3, kind: input, shape index: {}]
  %s4 = inlined_call_operand.vmem [shape: bf16[2,32,32], index: 4, kind: input, shape index: {}]
  %s5 = inlined_call_operand.vmem [shape: bf16[2,32,128], index: 5, kind: input, shape index: {}]
  %s6 = inlined_call_operand.vmem [shape: bf16[2,128,32], index: 6, kind: input, shape index: {}]
  %s7 = inlined_call_operand.vmem [shape: f32[2,8,128], index: 7, kind: input, shape index: {}]
  %s8 = inlined_call_operand.vmem [shape: f32[2,32], index: 8, kind: input, shape index: {}]
  %s9 = inlined_call_operand.vmem [shape: f32[32,128], index: 9, kind: input, shape index: {}]
  %s10 = inlined_call_operand.vmem [shape: f32[1,128], index: 10, kind: input, shape index: {}]
  %s11 = inlined_call_operand.hbm [shape: f32[2,1,128], index: 11, kind: output, shape index: {}]
  %s12 = sld [smem:[#allocation0]]
  $region85: #{ast_forward.1} parent=0
    _
  %s14 = ssub.s32 1, %s12
  %s15 = scalar_select 0, %s14, %s12
  $region1: #{ast_forward.1} parent=0
    #allocation3 [shape = 'u8[1024]{0}', space=vmem, size = 0x400, scoped, tag = 'output window, operand 0']
    #allocation4 [shape = 's32[2]{0}', space=sflag, size = 0x8, scoped, tag = 'scoped memory for ast_forward.1']
    %16 = vsyncpa [#allocation4], 0
    %s17 = scalar_lea.sflag [#allocation4], 1
    %18 = vsyncpa %s17, 0
    loop: start=0, step=1, limit=6
    $region2: #{ast_forward.1} parent=1 // loop_pre_header
      _
    $region3: #{ast_forward.1} parent=1 // loop_header
      %s20 = sphi 0, %s24
      %p21 = scmp.ge.s32.totalorder %s20, 6
      %s27 = sphi 0, %s39
      %s28 = sphi 0, %s35
      %s29 = sphi 0, %s27
      %s30 = sphi 0, %s28
      %s31 = sphi 0, %s29
      %s32 = sphi 0, %s30
      %s42 = sphi 0, %s44
      %s45 = sphi 0, %s42
      %s46 = sphi 0, %s45
      %s62 = sphi 0, %s46
      %s66 = sphi 0, %s66
      %s68 = sphi 0, %s66
      %s69 = sphi 0, %s68
      %s83 = sphi 0, %s69
      %s87 = sphi 0, %s87
      %s89 = sphi 0, %s87
      %s90 = sphi 0, %s89
      %s104 = sphi 0, %s90
      %s110 = sphi 0, %s112
      %s113 = sphi 0, %s110
      %s114 = sphi 0, %s113
      %s130 = sphi 0, %s114
      %s136 = sphi 0, %s138
      %s139 = sphi 0, %s136
      %s140 = sphi 0, %s139
      %s156 = sphi 0, %s140
      %s162 = sphi 0, %s164
      %s165 = sphi 0, %s162
      %s166 = sphi 0, %s165
      %s182 = sphi 0, %s166
      %s188 = sphi 0, %s190
      %s191 = sphi 0, %s188
      %s192 = sphi 0, %s191
      %s208 = sphi 0, %s192
      %s214 = sphi 0, %s216
      %s217 = sphi 0, %s214
      %s218 = sphi 0, %s217
      %s234 = sphi 0, %s218
      %s238 = sphi 0, %s238
      %s240 = sphi 0, %s238
      %s241 = sphi 0, %s240
      %s255 = sphi 0, %s241
      %s259 = sphi 0, %s259
      %s261 = sphi 0, %s259
      %s262 = sphi 0, %s261
      %s276 = sphi 0, %s262
      %s280 = sphi 0, %s280
      %s282 = sphi 0, %s280
      %s283 = sphi 0, %s282
      %s297 = sphi 0, %s283
      %s303 = sphi 0, %s305
      %s306 = sphi 0, %s303
      %s307 = sphi 0, %s306
      %s323 = sphi 0, %s307
    $region4: #{ast_forward.1} parent=1 // loop_header_branch
      %23 = sbr.rel (%p21) target = $region8
    $region5: #{ast_forward.1} parent=1 // loop_body
      %s25 = ssub.s32 %s20, 1
      %s26 = ssub.s32 %s20, 2
      %s33 = sadd.s32 1, %s28
      %p34 = scmp.ge.s32.totalorder %s33, 2
      %s35 = scalar_select %p34, 0, %s33
      %s36 = sadd.s32 1, %s27
      %s37 = scalar_select %p34, %s36, %s27
      %p38 = scmp.ge.s32.totalorder %s37, 2
      %s39 = scalar_select %p38, 0, %s37
      %s40 = ssub.s32 %s27, %s39
      %p41 = scmp.eq.s32.totalorder %s40, 0
      %s43 = sadd.s32 %s42, 1
      %s44 = scalar_select %p41, %s42, %s43
      %p47 = pneg %p41
      %p48 = scmp.eq.s32.totalorder %s20, 3
      %p49 = por %p47, %p48
      %p50 = scmp.ne.s32.totalorder %s42, %s45
      %p51 = scmp.eq.s32.totalorder %s20, 0
      %p52 = por %p50, %p51
      %p53 = scmp.ne.s32.totalorder %s42, %s45
      %p54 = scmp.eq.s32.totalorder %s25, 3
      %p55 = por %p53, %p54
      %p56 = scmp.ne.s32.totalorder %s45, %s46
      %p57 = scmp.eq.s32.totalorder %s25, 0
      %p58 = por %p56, %p57
      %p59 = scmp.ne.s32.totalorder %s45, %s46
      %p60 = scmp.eq.s32.totalorder %s26, 3
      %p61 = por %p59, %p60
      %p63 = scmp.ne.s32.totalorder %s46, %s62
      %p64 = scmp.eq.s32.totalorder %s26, 0
      %p65 = por %p63, %p64
      %s67 = sadd.s32 %s66, 1
      %p70 = scmp.eq.s32.totalorder %s20, 3
      %p71 = scmp.ne.s32.totalorder %s66, %s68
      %p72 = scmp.eq.s32.totalorder %s20, 0
      %p73 = por %p71, %p72
      %p74 = scmp.ne.s32.totalorder %s66, %s68
      %p75 = scmp.eq.s32.totalorder %s25, 3
      %p76 = por %p74, %p75
      %p77 = scmp.ne.s32.totalorder %s68, %s69
      %p78 = scmp.eq.s32.totalorder %s25, 0
      %p79 = por %p77, %p78
      %p80 = scmp.ne.s32.totalorder %s68, %s69
      %p81 = scmp.eq.s32.totalorder %s26, 3
      %p82 = por %p80, %p81
      %p84 = scmp.ne.s32.totalorder %s69, %s83
      %p85 = scmp.eq.s32.totalorder %s26, 0
      %p86 = por %p84, %p85
      %s88 = sadd.s32 %s87, 1
      %p91 = scmp.eq.s32.totalorder %s20, 3
      %p92 = scmp.ne.s32.totalorder %s87, %s89
      %p93 = scmp.eq.s32.totalorder %s20, 0
      %p94 = por %p92, %p93
      %p95 = scmp.ne.s32.totalorder %s87, %s89
      %p96 = scmp.eq.s32.totalorder %s25, 3
      %p97 = por %p95, %p96
      %p98 = scmp.ne.s32.totalorder %s89, %s90
      %p99 = scmp.eq.s32.totalorder %s25, 0
      %p100 = por %p98, %p99
      %p101 = scmp.ne.s32.totalorder %s89, %s90
      %p102 = scmp.eq.s32.totalorder %s26, 3
      %p103 = por %p101, %p102
      %p105 = scmp.ne.s32.totalorder %s90, %s104
      %p106 = scmp.eq.s32.totalorder %s26, 0
      %p107 = por %p105, %p106
      %s108 = ssub.s32 %s28, %s35
      %p109 = scmp.eq.s32.totalorder %s108, 0
      %s111 = sadd.s32 %s110, 1
      %s112 = scalar_select %p109, %s110, %s111
      %p115 = pneg %p109
      %p116 = scmp.eq.s32.totalorder %s20, 3
      %p117 = por %p115, %p116
      %p118 = scmp.ne.s32.totalorder %s110, %s113
      %p119 = scmp.eq.s32.totalorder %s20, 0
      %p120 = por %p118, %p119
      %p121 = scmp.ne.s32.totalorder %s110, %s113
      %p122 = scmp.eq.s32.totalorder %s25, 3
      %p123 = por %p121, %p122
      %p124 = scmp.ne.s32.totalorder %s113, %s114
      %p125 = scmp.eq.s32.totalorder %s25, 0
      %p126 = por %p124, %p125
      %p127 = scmp.ne.s32.totalorder %s113, %s114
      %p128 = scmp.eq.s32.totalorder %s26, 3
      %p129 = por %p127, %p128
      %p131 = scmp.ne.s32.totalorder %s114, %s130
      %p132 = scmp.eq.s32.totalorder %s26, 0
      %p133 = por %p131, %p132
      %s134 = ssub.s32 %s28, %s35
      %p135 = scmp.eq.s32.totalorder %s134, 0
      %s137 = sadd.s32 %s136, 1
      %s138 = scalar_select %p135, %s136, %s137
      %p141 = pneg %p135
      %p142 = scmp.eq.s32.totalorder %s20, 3
      %p143 = por %p141, %p142
      %p144 = scmp.ne.s32.totalorder %s136, %s139
      %p145 = scmp.eq.s32.totalorder %s20, 0
      %p146 = por %p144, %p145
      %p147 = scmp.ne.s32.totalorder %s136, %s139
      %p148 = scmp.eq.s32.totalorder %s25, 3
      %p149 = por %p147, %p148
      %p150 = scmp.ne.s32.totalorder %s139, %s140
      %p151 = scmp.eq.s32.totalorder %s25, 0
      %p152 = por %p150, %p151
      %p153 = scmp.ne.s32.totalorder %s139, %s140
      %p154 = scmp.eq.s32.totalorder %s26, 3
      %p155 = por %p153, %p154
      %p157 = scmp.ne.s32.totalorder %s140, %s156
      %p158 = scmp.eq.s32.totalorder %s26, 0
      %p159 = por %p157, %p158
      %s160 = ssub.s32 %s28, %s35
      %p161 = scmp.eq.s32.totalorder %s160, 0
      %s163 = sadd.s32 %s162, 1
      %s164 = scalar_select %p161, %s162, %s163
      %p167 = pneg %p161
      %p168 = scmp.eq.s32.totalorder %s20, 3
      %p169 = por %p167, %p168
      %p170 = scmp.ne.s32.totalorder %s162, %s165
      %p171 = scmp.eq.s32.totalorder %s20, 0
      %p172 = por %p170, %p171
      %p173 = scmp.ne.s32.totalorder %s162, %s165
      %p174 = scmp.eq.s32.totalorder %s25, 3
      %p175 = por %p173, %p174
      %p176 = scmp.ne.s32.totalorder %s165, %s166
      %p177 = scmp.eq.s32.totalorder %s25, 0
      %p178 = por %p176, %p177
      %p179 = scmp.ne.s32.totalorder %s165, %s166
      %p180 = scmp.eq.s32.totalorder %s26, 3
      %p181 = por %p179, %p180
      %p183 = scmp.ne.s32.totalorder %s166, %s182
      %p184 = scmp.eq.s32.totalorder %s26, 0
      %p185 = por %p183, %p184
      %s186 = ssub.s32 %s28, %s35
      %p187 = scmp.eq.s32.totalorder %s186, 0
      %s189 = sadd.s32 %s188, 1
      %s190 = scalar_select %p187, %s188, %s189
      %p193 = pneg %p187
      %p194 = scmp.eq.s32.totalorder %s20, 3
      %p195 = por %p193, %p194
      %p196 = scmp.ne.s32.totalorder %s188, %s191
      %p197 = scmp.eq.s32.totalorder %s20, 0
      %p198 = por %p196, %p197
      %p199 = scmp.ne.s32.totalorder %s188, %s191
      %p200 = scmp.eq.s32.totalorder %s25, 3
      %p201 = por %p199, %p200
      %p202 = scmp.ne.s32.totalorder %s191, %s192
      %p203 = scmp.eq.s32.totalorder %s25, 0
      %p204 = por %p202, %p203
      %p205 = scmp.ne.s32.totalorder %s191, %s192
      %p206 = scmp.eq.s32.totalorder %s26, 3
      %p207 = por %p205, %p206
      %p209 = scmp.ne.s32.totalorder %s192, %s208
      %p210 = scmp.eq.s32.totalorder %s26, 0
      %p211 = por %p209, %p210
      %s212 = ssub.s32 %s28, %s35
      %p213 = scmp.eq.s32.totalorder %s212, 0
      %s215 = sadd.s32 %s214, 1
      %s216 = scalar_select %p213, %s214, %s215
      %p219 = pneg %p213
      %p220 = scmp.eq.s32.totalorder %s20, 3
      %p221 = por %p219, %p220
      %p222 = scmp.ne.s32.totalorder %s214, %s217
      %p223 = scmp.eq.s32.totalorder %s20, 0
      %p224 = por %p222, %p223
      %p225 = scmp.ne.s32.totalorder %s214, %s217
      %p226 = scmp.eq.s32.totalorder %s25, 3
      %p227 = por %p225, %p226
      %p228 = scmp.ne.s32.totalorder %s217, %s218
      %p229 = scmp.eq.s32.totalorder %s25, 0
      %p230 = por %p228, %p229
      %p231 = scmp.ne.s32.totalorder %s217, %s218
      %p232 = scmp.eq.s32.totalorder %s26, 3
      %p233 = por %p231, %p232
      %p235 = scmp.ne.s32.totalorder %s218, %s234
      %p236 = scmp.eq.s32.totalorder %s26, 0
      %p237 = por %p235, %p236
      %s239 = sadd.s32 %s238, 1
      %p242 = scmp.eq.s32.totalorder %s20, 3
      %p243 = scmp.ne.s32.totalorder %s238, %s240
      %p244 = scmp.eq.s32.totalorder %s20, 0
      %p245 = por %p243, %p244
      %p246 = scmp.ne.s32.totalorder %s238, %s240
      %p247 = scmp.eq.s32.totalorder %s25, 3
      %p248 = por %p246, %p247
      %p249 = scmp.ne.s32.totalorder %s240, %s241
      %p250 = scmp.eq.s32.totalorder %s25, 0
      %p251 = por %p249, %p250
      %p252 = scmp.ne.s32.totalorder %s240, %s241
      %p253 = scmp.eq.s32.totalorder %s26, 3
      %p254 = por %p252, %p253
      %p256 = scmp.ne.s32.totalorder %s241, %s255
      %p257 = scmp.eq.s32.totalorder %s26, 0
      %p258 = por %p256, %p257
      %s260 = sadd.s32 %s259, 1
      %p263 = scmp.eq.s32.totalorder %s20, 3
      %p264 = scmp.ne.s32.totalorder %s259, %s261
      %p265 = scmp.eq.s32.totalorder %s20, 0
      %p266 = por %p264, %p265
      %p267 = scmp.ne.s32.totalorder %s259, %s261
      %p268 = scmp.eq.s32.totalorder %s25, 3
      %p269 = por %p267, %p268
      %p270 = scmp.ne.s32.totalorder %s261, %s262
      %p271 = scmp.eq.s32.totalorder %s25, 0
      %p272 = por %p270, %p271
      %p273 = scmp.ne.s32.totalorder %s261, %s262
      %p274 = scmp.eq.s32.totalorder %s26, 3
      %p275 = por %p273, %p274
      %p277 = scmp.ne.s32.totalorder %s262, %s276
      %p278 = scmp.eq.s32.totalorder %s26, 0
      %p279 = por %p277, %p278
      %s281 = sadd.s32 %s280, 1
      %p284 = scmp.eq.s32.totalorder %s20, 3
      %p285 = scmp.ne.s32.totalorder %s280, %s282
      %p286 = scmp.eq.s32.totalorder %s20, 0
      %p287 = por %p285, %p286
      %p288 = scmp.ne.s32.totalorder %s280, %s282
      %p289 = scmp.eq.s32.totalorder %s25, 3
      %p290 = por %p288, %p289
      %p291 = scmp.ne.s32.totalorder %s282, %s283
      %p292 = scmp.eq.s32.totalorder %s25, 0
      %p293 = por %p291, %p292
      %p294 = scmp.ne.s32.totalorder %s282, %s283
      %p295 = scmp.eq.s32.totalorder %s26, 3
      %p296 = por %p294, %p295
      %p298 = scmp.ne.s32.totalorder %s283, %s297
      %p299 = scmp.eq.s32.totalorder %s26, 0
      %p300 = por %p298, %p299
      %s301 = ssub.s32 %s27, %s39
      %p302 = scmp.eq.s32.totalorder %s301, 0
      %s304 = sadd.s32 %s303, 1
      %s305 = scalar_select %p302, %s303, %s304
      %p308 = pneg %p302
      %p309 = scmp.eq.s32.totalorder %s20, 3
      %p310 = por %p308, %p309
      %p311 = scmp.ne.s32.totalorder %s303, %s306
      %p312 = scmp.eq.s32.totalorder %s20, 0
      %p313 = por %p311, %p312
      %p314 = scmp.ne.s32.totalorder %s303, %s306
      %p315 = scmp.eq.s32.totalorder %s25, 3
      %p316 = por %p314, %p315
      %p317 = scmp.ne.s32.totalorder %s306, %s307
      %p318 = scmp.eq.s32.totalorder %s25, 0
      %p319 = por %p317, %p318
      %p320 = scmp.ne.s32.totalorder %s306, %s307
      %p321 = scmp.eq.s32.totalorder %s26, 3
      %p322 = por %p320, %p321
      %p324 = scmp.ne.s32.totalorder %s307, %s323
      %p325 = scmp.eq.s32.totalorder %s26, 0
      %p326 = por %p324, %p325
      %p327 = scmp.le.s32.totalorder 1, %s20
      %p328 = scmp.lt.s32.totalorder %s20, 5
      %p329 = pnand %p327, %p328
      %p330 = pneg %p329
      // Predicated region
      $region9: #{ast_forward.1} parent=5 // pred_check
        _
      $region10: #{ast_forward.1} parent=5 // pred_check_branch
        %332 = sbr.rel (%p329) target = $region12
      $region11: #{ast_forward.1} parent=5 // pred_region
        %s333 = ssub.s32 %s20, 1
        // Predicated region
        $region13: #{ast_forward.1} parent=11 // pred_check
          %p334 = pneg %p79
        $region14: #{ast_forward.1} parent=11 // pred_check_branch
          %336 = sbr.rel (%p334) target = $region16
        $region15: #{ast_forward.1} parent=11 // pred_region
          _
        $region16: #{ast_forward.1} parent=11 // pred_fallthru
          _
        // Predicated region
        $region17: #{ast_forward.1} parent=11 // pred_check
          %p337 = pneg %p100
        $region18: #{ast_forward.1} parent=11 // pred_check_branch
          %339 = sbr.rel (%p337) target = $region20
        $region19: #{ast_forward.1} parent=11 // pred_region
          _
        $region20: #{ast_forward.1} parent=11 // pred_fallthru
          _
        // Predicated region
        $region21: #{ast_forward.1} parent=11 // pred_check
          %p340 = pneg %p251
        $region22: #{ast_forward.1} parent=11 // pred_check_branch
          %342 = sbr.rel (%p340) target = $region24
        $region23: #{ast_forward.1} parent=11 // pred_region
          _
        $region24: #{ast_forward.1} parent=11 // pred_fallthru
          _
        // Predicated region
        $region25: #{ast_forward.1} parent=11 // pred_check
          %p343 = pneg %p272
        $region26: #{ast_forward.1} parent=11 // pred_check_branch
          %345 = sbr.rel (%p343) target = $region28
        $region27: #{ast_forward.1} parent=11 // pred_region
          _
        $region28: #{ast_forward.1} parent=11 // pred_fallthru
          _
        // Predicated region
        $region29: #{ast_forward.1} parent=11 // pred_check
          %p346 = pneg %p293
        $region30: #{ast_forward.1} parent=11 // pred_check_branch
          %348 = sbr.rel (%p346) target = $region32
        $region31: #{ast_forward.1} parent=11 // pred_region
          _
        $region32: #{ast_forward.1} parent=11 // pred_fallthru
          _
      $region12: #{ast_forward.1} parent=5 // pred_fallthru
        _
      %p349 = scmp.lt.s32.totalorder %s20, 4
      // Predicated region
      $region33: #{ast_forward.1} parent=5 // pred_check
        %p350 = pneg %p349
      $region34: #{ast_forward.1} parent=5 // pred_check_branch
        %352 = sbr.rel (%p350) target = $region36
      $region35: #{ast_forward.1} parent=5 // pred_region
        // Predicated region
        $region37: #{ast_forward.1} parent=35 // pred_check
          %p353 = pneg %p52
        $region38: #{ast_forward.1} parent=35 // pred_check_branch
          %355 = sbr.rel (%p353) target = $region40
        $region39: #{ast_forward.1} parent=35 // pred_region
          %p356 = scmp.lt.s32.totalorder %s27, 1
          %s357 = scalar_select %p356, %s27, 1
          %s358 = smul.addr %s357, 3
          %s359 = smul.addr %s358, 8
          %s360 = scalar_lea.vmem %s0, %s359
        $region40: #{ast_forward.1} parent=35 // pred_fallthru
          _
        // Predicated region
        $region41: #{ast_forward.1} parent=35 // pred_check
          %p361 = pneg %p120
        $region42: #{ast_forward.1} parent=35 // pred_check_branch
          %363 = sbr.rel (%p361) target = $region44
        $region43: #{ast_forward.1} parent=35 // pred_region
          %p364 = scmp.lt.s32.totalorder %s28, 1
          %s365 = scalar_select %p364, %s28, 1
          %s366 = smul.addr %s365, 4
          %s367 = smul.addr %s366, 4
          %s368 = scalar_lea.vmem %s3, %s367
        $region44: #{ast_forward.1} parent=35 // pred_fallthru
          _
        // Predicated region
        $region45: #{ast_forward.1} parent=35 // pred_check
          %p369 = pneg %p146
        $region46: #{ast_forward.1} parent=35 // pred_check_branch
          %371 = sbr.rel (%p369) target = $region48
        $region47: #{ast_forward.1} parent=35 // pred_region
          %p372 = scmp.lt.s32.totalorder %s28, 1
          %s373 = scalar_select %p372, %s28, 1
          %s374 = smul.addr %s373, 4
          %s375 = smul.addr %s374, 4
          %s376 = scalar_lea.vmem %s4, %s375
        $region48: #{ast_forward.1} parent=35 // pred_fallthru
          _
        // Predicated region
        $region49: #{ast_forward.1} parent=35 // pred_check
          %p377 = pneg %p172
        $region50: #{ast_forward.1} parent=35 // pred_check_branch
          %379 = sbr.rel (%p377) target = $region52
        $region51: #{ast_forward.1} parent=35 // pred_region
          %p380 = scmp.lt.s32.totalorder %s28, 1
          %s381 = scalar_select %p380, %s28, 1
          %s382 = smul.addr %s381, 4
          %s383 = smul.addr %s382, 4
          %s384 = scalar_lea.vmem %s5, %s383
        $region52: #{ast_forward.1} parent=35 // pred_fallthru
          _
        // Predicated region
        $region53: #{ast_forward.1} parent=35 // pred_check
          %p385 = pneg %p198
        $region54: #{ast_forward.1} parent=35 // pred_check_branch
          %387 = sbr.rel (%p385) target = $region56
        $region55: #{ast_forward.1} parent=35 // pred_region
          %p388 = scmp.lt.s32.totalorder %s28, 1
          %s389 = scalar_select %p388, %s28, 1
          %s390 = smul.addr %s389, 16
          %s391 = smul.addr %s390, 4
          %s392 = scalar_lea.vmem %s6, %s391
        $region56: #{ast_forward.1} parent=35 // pred_fallthru
          _
        // Predicated region
        $region57: #{ast_forward.1} parent=35 // pred_check
          %p393 = pneg %p224
        $region58: #{ast_forward.1} parent=35 // pred_check_branch
          %395 = sbr.rel (%p393) target = $region60
        $region59: #{ast_forward.1} parent=35 // pred_region
          %p396 = scmp.lt.s32.totalorder %s28, 1
          %s397 = scalar_select %p396, %s28, 1
          %s398 = smul.addr %s397, 8
          %s399 = scalar_lea.vmem %s7, %s398
        $region60: #{ast_forward.1} parent=35 // pred_fallthru
          _
      $region36: #{ast_forward.1} parent=5 // pred_fallthru
        _
      %p400 = scmp.le.s32.totalorder 1, %s20
      %p401 = scmp.lt.s32.totalorder %s20, 5
      %p402 = pnand %p400, %p401
      %p403 = pneg %p402
      // Predicated region
      $region61: #{ast_forward.1} parent=5 // pred_check
        _
      $region62: #{ast_forward.1} parent=5 // pred_check_branch
        %405 = sbr.rel (%p402) target = $region64
      $region63: #{ast_forward.1} parent=5 // pred_region
        %s406 = ssub.s32 %s20, 1
        %p407 = scmp.lt.s32.totalorder %s29, 1
        %s408 = scalar_select %p407, %s29, 1
        %s409 = smul.addr %s408, 3
        %s410 = smul.addr %s409, 8
        %s411 = scalar_lea.vmem %s0, %s410
        %p412 = pneg %p58
        %p413 = pneg %p55
        %p414 = pneg %p79
        %p415 = pneg %p76
        %p416 = pneg %p100
        %p417 = pneg %p97
        %p418 = scmp.lt.s32.totalorder %s30, 1
        %s419 = scalar_select %p418, %s30, 1
        %s420 = smul.addr %s419, 4
        %s421 = smul.addr %s420, 4
        %s422 = scalar_lea.vmem %s3, %s421
        %p423 = pneg %p126
        %p424 = pneg %p123
        %p425 = scmp.lt.s32.totalorder %s30, 1
        %s426 = scalar_select %p425, %s30, 1
        %s427 = smul.addr %s426, 4
        %s428 = smul.addr %s427, 4
        %s429 = scalar_lea.vmem %s4, %s428
        %p430 = pneg %p152
        %p431 = pneg %p149
        %p432 = scmp.lt.s32.totalorder %s30, 1
        %s433 = scalar_select %p432, %s30, 1
        %s434 = smul.addr %s433, 4
        %s435 = smul.addr %s434, 4
        %s436 = scalar_lea.vmem %s5, %s435
        %p437 = pneg %p178
        %p438 = pneg %p175
        %p439 = scmp.lt.s32.totalorder %s30, 1
        %s440 = scalar_select %p439, %s30, 1
        %s441 = smul.addr %s440, 16
        %s442 = smul.addr %s441, 4
        %s443 = scalar_lea.vmem %s6, %s442
        %p444 = pneg %p204
        %p445 = pneg %p201
        %p446 = scmp.lt.s32.totalorder %s30, 1
        %s447 = scalar_select %p446, %s30, 1
        %s448 = smul.addr %s447, 8
        %s449 = scalar_lea.vmem %s7, %s448
        %p450 = pneg %p230
        %p451 = pneg %p227
        %p452 = pneg %p251
        %p453 = pneg %p248
        %p454 = pneg %p272
        %p455 = pneg %p269
        %p456 = pneg %p293
        %p457 = pneg %p290
        %p458 = pneg %p319
        %p459 = pneg %p316
        %s460 = sand.u32 %s306, 1
        %s461 = scalar_lea.sflag [#allocation4], %s460
        %s462 = sand.u32 %s306, 1
        %s463 = scalar_lea.vmem [#allocation3], %s462
        %p464 = scmp.lt.s32.totalorder %s29, 1
        %s465 = scalar_select %p464, %s29, 1
        %s466 = smul.addr %s465, 3
        %s467 = smul.addr %s466, 8
        %s468 = scalar_lea.vmem %s0, %s467
        %p469 = scmp.lt.s32.totalorder %s30, 1
        %s470 = scalar_select %p469, %s30, 1
        %s471 = smul.addr %s470, 4
        %s472 = smul.addr %s471, 4
        %s473 = scalar_lea.vmem %s3, %s472
        %p474 = scmp.lt.s32.totalorder %s30, 1
        %s475 = scalar_select %p474, %s30, 1
        %s476 = smul.addr %s475, 4
        %s477 = smul.addr %s476, 4
        %s478 = scalar_lea.vmem %s4, %s477
        %p479 = scmp.lt.s32.totalorder %s30, 1
        %s480 = scalar_select %p479, %s30, 1
        %s481 = smul.addr %s480, 4
        %s482 = smul.addr %s481, 4
        %s483 = scalar_lea.vmem %s5, %s482
        %p484 = scmp.lt.s32.totalorder %s30, 1
        %s485 = scalar_select %p484, %s30, 1
        %s486 = smul.addr %s485, 16
        %s487 = smul.addr %s486, 4
        %s488 = scalar_lea.vmem %s6, %s487
        %p489 = scmp.lt.s32.totalorder %s30, 1
        %s490 = scalar_select %p489, %s30, 1
        %s491 = smul.addr %s490, 8
        %s492 = scalar_lea.vmem %s7, %s491
        %p494 = scmp.eq.s32.totalorder %s30, 0
        // Predicated region
        $region65: #{ast_forward.1} parent=63 // pred_check
          %p495 = pneg %p494
        $region66: #{ast_forward.1} parent=63 // pred_check_branch
          %497 = sbr.rel (%p495) target = $region68
        $region67: #{ast_forward.1} parent=63 // pred_region
          %v498 = vld [vmem:[%s468] sm:$0xff]
          %v499 = vld [vmem:[%s468 + $0x8] sm:$0xff]
          %v500 = vld [vmem:[%s468 + $0x10] sm:$0xff]
          %v501 = vld [vmem:[%s1] sm:$0xff]
          %v502 = vld [vmem:[%s1 + $0x8] sm:$0xff]
          %v503 = vld [vmem:[%s1 + $0x10] sm:$0xff]
          %v504 = vld [vmem:[%s1 + $0x18] sm:$0xff]
          %v505 = vld [vmem:[%s1 + $0x20] sm:$0xff]
          %v506 = vld [vmem:[%s1 + $0x28] sm:$0xff]
          %v507 = vld [vmem:[%s1 + $0x30] sm:$0xff]
          %v508 = vld [vmem:[%s1 + $0x38] sm:$0xff]
          %v509 = vld [vmem:[%s2] sm:$0xff]
          %v510 = vld [vmem:[%s2 + $0x8] sm:$0xff]
          %v511 = vld [vmem:[%s2 + $0x10] sm:$0xff]
          %vm512 = vcmask 523264
          %v514 = vsel %vm512, %v498, 0
          %v517 = vsel %vm512, %v499, 0
          %v520 = vsel %vm512, %v500, 0
          %522 = vmatprep.subr.mxu0 0.0
          %523 = vmatpush1.msra.mxu0 0.0
          %524 = vmatprep.subr.mxu0 0.0
          %525 = vmatpush1.msra.mxu0 0.0
          %526 = vmatprep.subr.mxu0 0.0
          %527 = vmatpush1.msra.mxu0 0.0
          %528 = vmatprep.subr.mxu0 0.0
          %529 = vmatpush1.msra.mxu0 0.0
          %530 = vmatprep.subr.mxu0 0.0
          %531 = vmatpush1.msra.mxu0 0.0
          %532 = vmatprep.subr.mxu0 0.0
          %533 = vmatpush1.msra.mxu0 0.0
          %534 = vmatprep.subr.mxu0 0.0
          %535 = vmatpush1.msra.mxu0 0.0
          %536 = vmatprep.subr.mxu0 0.0
          %537 = vmatpush1.msra.mxu0 0.0
          %538 = vmatprep.subr.mxu0 0.0
          %539 = vmatpush1.msra.mxu0 %v508
          %540 = vmatprep.subr.mxu0 0.0
          %541 = vmatpush1.msra.mxu0 %v507
          %542 = vmatprep.subr.mxu0 0.0
          %543 = vmatpush1.msra.mxu0 %v506
          %544 = vmatprep.subr.mxu0 0.0
          %545 = vmatpush1.msra.mxu0 %v505
          %546 = vmatprep.subr.mxu0 0.0
          %547 = vmatpush1.msra.mxu0 %v504
          %548 = vmatprep.subr.mxu0 0.0
          %549 = vmatpush1.msra.mxu0 %v503
          %550 = vmatprep.subr.mxu0 0.0
          %551 = vmatpush1.msra.mxu0 %v502
          %552 = vmatprep.subr.mxu0 0.0
          %553 = vmatpush1.msra.mxu0 %v501
          %554 = vmatprep.subr.mxu0 0.0
          %555 = vmatpush2.msra.mxu0 0.0
          %556 = vmatprep.subr.mxu0 0.0
          %557 = vmatpush2.msra.mxu0 0.0
          %558 = vmatprep.subr.mxu0 0.0
          %559 = vmatpush2.msra.mxu0 0.0
          %560 = vmatprep.subr.mxu0 0.0
          %561 = vmatpush2.msra.mxu0 0.0
          %562 = vmatprep.subr.mxu0 0.0
          %563 = vmatpush2.msra.mxu0 0.0
          %564 = vmatprep.subr.mxu0 0.0
          %565 = vmatpush2.msra.mxu0 0.0
          %566 = vmatprep.subr.mxu0 0.0
          %567 = vmatpush2.msra.mxu0 0.0
          %568 = vmatprep.subr.mxu0 0.0
          %569 = vmatpush2.msra.mxu0 0.0
          %570 = vmatprep.subr.mxu0 0.0
          %571 = vmatpush2.msra.mxu0 0.0
          %572 = vmatprep.subr.mxu0 0.0
          %573 = vmatpush2.msra.mxu0 0.0
          %574 = vmatprep.subr.mxu0 0.0
          %575 = vmatpush2.msra.mxu0 0.0
          %576 = vmatprep.subr.mxu0 0.0
          %577 = vmatpush2.msra.mxu0 0.0
          %578 = vmatprep.subr.mxu0 0.0
          %579 = vmatpush2.msra.mxu0 0.0
          %580 = vmatprep.subr.mxu0 0.0
          %581 = vmatpush2.msra.mxu0 0.0
          %582 = vmatprep.subr.mxu0 0.0
          %583 = vmatpush2.msra.mxu0 0.0
          %584 = vmatprep.subr.mxu0 0.0
          %585 = vmatpush2.msra.mxu0 0.0
          %586 = vmatprep.mubr.f32.mxu0 0.0
          %587 = vmatmul.mubr.f32.gmra.mxu0 %v514
          %v588 = vpop.f32.mrf.mxu0
          %v589 = vadd.f32 %v509, %v588
          %v590 = vpop.f32.mrf.mxu0
          %591 = vmatprep.mubr.f32.mxu0 0.0
          %592 = vmatmul.mubr.f32.gmra.mxu0 %v517
          %v593 = vpop.f32.mrf.mxu0
          %v594 = vadd.f32 %v510, %v593
          %v595 = vpop.f32.mrf.mxu0
          %596 = vmatprep.mubr.f32.mxu0 0.0
          %597 = vmatmul.mubr.f32.gmra.mxu0 %v520
          %v598 = vpop.f32.mrf.mxu0
          %v599 = vadd.f32 %v511, %v598
          %v600 = vpop.f32.mrf.mxu0
          %601 = vdwg.mxu0
          %vm602 = vcmask 261120
          %603 = vst.msk [vmem:[#allocation2] sm:$0xff] %vm602, %v589
          %604 = vst.msk [vmem:[#allocation2 + $0x8] sm:$0xff] %vm602, %v594
          %605 = vst.msk [vmem:[#allocation2 + $0x10] sm:$0xff] %vm602, %v599
        $region68: #{ast_forward.1} parent=63 // pred_fallthru
          _
        %v606 = vld [vmem:[%s473] sm:$0xf]
        %v607 = vld [vmem:[%s473 + $0x4] sm:$0xf]
        %v608 = vld [vmem:[%s473 + $0x8] sm:$0xf]
        %v609 = vld [vmem:[%s473 + $0xc] sm:$0xf]
        %v610 = vld [vmem:[%s478] sm:$0xf]
        %v611 = vld [vmem:[%s478 + $0x4] sm:$0xf]
        %v612 = vld [vmem:[%s478 + $0x8] sm:$0xf]
        %v613 = vld [vmem:[%s478 + $0xc] sm:$0xf]
        %v614 = vld [vmem:[%s483] sm:$0xf]
        %v615 = vld [vmem:[%s483 + $0x4] sm:$0xf]
        %v616 = vld [vmem:[%s483 + $0x8] sm:$0xf]
        %v617 = vld [vmem:[%s483 + $0xc] sm:$0xf]
        %v618 = vld [vmem:[%s488] sm:$0xf]
        %v619 = vld [vmem:[%s488 + $0x4] sm:$0xf]
        %v620 = vld [vmem:[%s488 + $0x8] sm:$0xf]
        %v621 = vld [vmem:[%s488 + $0xc] sm:$0xf]
        %v622 = vld [vmem:[%s488 + $0x10] sm:$0xf]
        %v623 = vld [vmem:[%s488 + $0x14] sm:$0xf]
        %v624 = vld [vmem:[%s488 + $0x18] sm:$0xf]
        %v625 = vld [vmem:[%s488 + $0x1c] sm:$0xf]
        %v626 = vld [vmem:[%s488 + $0x20] sm:$0xf]
        %v627 = vld [vmem:[%s488 + $0x24] sm:$0xf]
        %v628 = vld [vmem:[%s488 + $0x28] sm:$0xf]
        %v629 = vld [vmem:[%s488 + $0x2c] sm:$0xf]
        %v630 = vld [vmem:[%s488 + $0x30] sm:$0xf]
        %v631 = vld [vmem:[%s488 + $0x34] sm:$0xf]
        %v632 = vld [vmem:[%s488 + $0x38] sm:$0xf]
        %v633 = vld [vmem:[%s488 + $0x3c] sm:$0xf]
        %v634 = vld [vmem:[%s492] sm:$0xff]
        %v635 = vld [vmem:[#allocation2] sm:$0xff]
        %v636 = vld [vmem:[#allocation2 + $0x8] sm:$0xff]
        %v637 = vld [vmem:[#allocation2 + $0x10] sm:$0xff]
        %vm638 = vcmask 261120
        %v639 = vsel %vm638, %v635, 0.0
        %640 = vadd.xlane.f32.xlu0 %v639
        %v641 = vpop.xlane.xlu0 %640
        %v642 = vsel %vm638, %v636, 0.0
        %643 = vadd.xlane.f32.xlu0 %v642
        %v644 = vpop.xlane.xlu0 %643
        %v645 = vsel %vm638, %v637, 0.0
        %646 = vadd.xlane.f32.xlu0 %v645
        %v647 = vpop.xlane.xlu0 %646
        %v648 = vrcp.pop 32.0
        %v649 = vmul.f32 %v641, %v648
        %v650 = vmul.f32 %v644, %v648
        %v651 = vmul.f32 %v647, %v648
        %v652 = vsub.f32 %v635, %v649
        %v653 = vsub.f32 %v636, %v650
        %v654 = vsub.f32 %v637, %v651
        %v655 = vmul.f32 %v652, %v652
        %v656 = vmul.f32 %v653, %v653
        %v657 = vmul.f32 %v654, %v654
        %v658 = vsel %vm638, %v655, 0.0
        %659 = vadd.xlane.f32.xlu0 %v658
        %v660 = vpop.xlane.xlu0 %659
        %v661 = vsel %vm638, %v656, 0.0
        %662 = vadd.xlane.f32.xlu0 %v661
        %v663 = vpop.xlane.xlu0 %662
        %v664 = vsel %vm638, %v657, 0.0
        %665 = vadd.xlane.f32.xlu0 %v664
        %v666 = vpop.xlane.xlu0 %665
        %v667 = vmul.f32 %v660, %v648
        %v668 = vmul.f32 %v663, %v648
        %v669 = vmul.f32 %v666, %v648
        %v670 = vadd.f32 %v667, 1e-06
        %v671 = vadd.f32 %v668, 1e-06
        %v672 = vadd.f32 %v669, 1e-06
        %v673 = vrsqrt.pop %v670
        %v674 = vrsqrt.pop %v671
        %v675 = vrsqrt.pop %v672
        %v676 = vmul.f32 %v652, %v673
        %v677 = vmul.f32 %v653, %v674
        %v678 = vmul.f32 %v654, %v675
        %v679 = vlaneseq
        %v680 = vshrl.u32 %v679, 7
        %v681 = vsub.s32 0, %v680
        %v682 = vrot.slane %v634, %v681
        %v683 = vmul.f32 %v676, %v682
        %v684 = vmul.f32 %v677, %v682
        %v685 = vmul.f32 %v678, %v682
        %v686 = vlaneseq
        %v687 = vshrl.u32 %v686, 7
        %v688 = vsub.s32 1, %v687
        %v689 = vrot.slane %v634, %v688
        %v690 = vadd.f32 %v683, %v689
        %v691 = vadd.f32 %v684, %v689
        %v692 = vadd.f32 %v685, %v689
        %v693 = vpack.c.bf16 %v691, %v690
        %v694 = vpack.c.bf16 %v692, %v692
        %v695 = vlaneseq
        %v696 = vshrl.u32 %v695, 7
        %v697 = vsub.s32 6, %v696
        %v698 = vrot.slane %v634, %v697
        %v703 = vunpack.c.l.b16 %v606
        %v704 = vunpack.c.l.b16 %v607
        %v705 = vunpack.c.l.b16 %v608
        %v706 = vunpack.c.l.b16 %v609
        %v707 = vpack.c.b16 %v704, %v703
        %v708 = vpack.c.b16 %v706, %v705
        %v712 = vsel %vm638, %v693, 0
        %v715 = vsel %vm638, %v694, 0
        %717 = vmatprep.subr.bf16.mxu0 0
        %718 = vmatpush1.bf16.msra.mxu0 0
        %719 = vmatprep.subr.bf16.mxu0 0
        %720 = vmatpush1.bf16.msra.mxu0 0
        %721 = vmatprep.subr.bf16.mxu0 0
        %722 = vmatpush1.bf16.msra.mxu0 0
        %723 = vmatprep.subr.bf16.mxu0 0
        %724 = vmatpush1.bf16.msra.mxu0 0
        %725 = vmatprep.subr.bf16.mxu0 0
        %726 = vmatpush1.bf16.msra.mxu0 0
        %727 = vmatprep.subr.bf16.mxu0 0
        %728 = vmatpush1.bf16.msra.mxu0 0
        %729 = vmatprep.subr.bf16.mxu0 0
        %730 = vmatpush1.bf16.msra.mxu0 %v708
        %731 = vmatprep.subr.bf16.mxu0 0
        %732 = vmatpush1.bf16.msra.mxu0 %v707
        %733 = vmatprep.subr.bf16.mxu0 0
        %734 = vmatpush2.bf16.msra.mxu0 0
        %735 = vmatprep.subr.bf16.mxu0 0
        %736 = vmatpush2.bf16.msra.mxu0 0
        %737 = vmatprep.subr.bf16.mxu0 0
        %738 = vmatpush2.bf16.msra.mxu0 0
        %739 = vmatprep.subr.bf16.mxu0 0
        %740 = vmatpush2.bf16.msra.mxu0 0
        %741 = vmatprep.subr.bf16.mxu0 0
        %742 = vmatpush2.bf16.msra.mxu0 0
        %743 = vmatprep.subr.bf16.mxu0 0
        %744 = vmatpush2.bf16.msra.mxu0 0
        %745 = vmatprep.subr.bf16.mxu0 0
        %746 = vmatpush2.bf16.msra.mxu0 0
        %747 = vmatprep.subr.bf16.mxu0 0
        %748 = vmatpush2.bf16.msra.mxu0 0
        %749 = vmatprep.mubr.bf16.mxu0 0
        %750 = vmatmul.mubr.bf16.gmra.mxu0 %v712
        %v751 = vpop.f32.mrf.mxu0
        %v752 = vadd.f32 %v698, %v751
        %v753 = vpop.f32.mrf.mxu0
        %v754 = vpop.f32.mrf.mxu0
        %v755 = vadd.f32 %v698, %v754
        %v756 = vpop.f32.mrf.mxu0
        %757 = vmatprep.mubr.bf16.mxu0 0
        %758 = vmatmul.mubr.bf16.gmra.mxu0 %v715
        %v759 = vpop.f32.mrf.mxu0
        %v760 = vadd.f32 %v698, %v759
        %v761 = vpop.f32.mrf.mxu0
        %v762 = vpop.f32.mrf.mxu0
        %v763 = vpop.f32.mrf.mxu0
        %764 = vdwg.mxu0
        %v765 = vlaneseq
        %v766 = vand.u32 %v765, 127
        %vm767 = vcmp.lt.s32.totalorder %v766, 17
        %771 = vrot.lane.b32.xlu0 %v752, 96
        %v772 = vpop.permute.xlu0 %771
        %773 = vrot.lane.b32.xlu0 %v755, 96
        %v774 = vpop.permute.xlu0 %773
        %775 = vrot.lane.b32.xlu0 %v760, 96
        %v776 = vpop.permute.xlu0 %775
        %vm777 = vcmask 64512
        %v778 = vsel %vm777, %v752, 0
        %v780 = vsel %vm777, %v755, 0
        %v782 = vsel %vm777, %v760, 0
        %v784 = vsel %vm777, %v772, 0
        %v786 = vsel %vm777, %v774, 0
        %v788 = vsel %vm777, %v776, 0
        %790 = vmatprep.subr.mxu0 0.0
        %791 = vmatpush1.xpose.msra.mxu0 0.0
        %792 = vmatprep.subr.mxu0 0.0
        %793 = vmatpush1.xpose.msra.mxu0 0.0
        %794 = vmatprep.subr.mxu0 0.0
        %795 = vmatpush1.xpose.msra.mxu0 0.0
        %796 = vmatprep.subr.mxu0 0.0
        %797 = vmatpush1.xpose.msra.mxu0 0.0
        %798 = vmatprep.subr.mxu0 0.0
        %799 = vmatpush1.xpose.msra.mxu0 0.0
        %800 = vmatprep.subr.mxu0 0.0
        %801 = vmatpush1.xpose.msra.mxu0 0.0
        %802 = vmatprep.subr.mxu0 0.0
        %803 = vmatpush1.xpose.msra.mxu0 0.0
        %804 = vmatprep.subr.mxu0 0.0
        %805 = vmatpush1.xpose.msra.mxu0 0.0
        %806 = vmatprep.subr.mxu0 0.0
        %807 = vmatpush1.xpose.msra.mxu0 0.0
        %808 = vmatprep.subr.mxu0 0.0
        %809 = vmatpush1.xpose.msra.mxu0 0.0
        %810 = vmatprep.subr.mxu0 0.0
        %811 = vmatpush1.xpose.msra.mxu0 0.0
        %812 = vmatprep.subr.mxu0 0.0
        %813 = vmatpush1.xpose.msra.mxu0 0.0
        %814 = vmatprep.subr.mxu0 0.0
        %815 = vmatpush1.xpose.msra.mxu0 0.0
        %816 = vmatprep.subr.mxu0 0.0
        %817 = vmatpush1.xpose.msra.mxu0 %v788
        %818 = vmatprep.subr.mxu0 0.0
        %819 = vmatpush1.xpose.msra.mxu0 %v786
        %820 = vmatprep.subr.mxu0 0.0
        %821 = vmatpush1.xpose.msra.mxu0 %v784
        %822 = vmatprep.subr.mxu0 0.0
        %823 = vmatpush2.xpose.msra.mxu0 0.0
        %824 = vmatprep.subr.mxu0 0.0
        %825 = vmatpush2.xpose.msra.mxu0 0.0
        %826 = vmatprep.subr.mxu0 0.0
        %827 = vmatpush2.xpose.msra.mxu0 0.0
        %828 = vmatprep.subr.mxu0 0.0
        %829 = vmatpush2.xpose.msra.mxu0 0.0
        %830 = vmatprep.subr.mxu0 0.0
        %831 = vmatpush2.xpose.msra.mxu0 0.0
        %832 = vmatprep.subr.mxu0 0.0
        %833 = vmatpush2.xpose.msra.mxu0 0.0
        %834 = vmatprep.subr.mxu0 0.0
        %835 = vmatpush2.xpose.msra.mxu0 0.0
        %836 = vmatprep.subr.mxu0 0.0
        %837 = vmatpush2.xpose.msra.mxu0 0.0
        %838 = vmatprep.subr.mxu0 0.0
        %839 = vmatpush2.xpose.msra.mxu0 0.0
        %840 = vmatprep.subr.mxu0 0.0
        %841 = vmatpush2.xpose.msra.mxu0 0.0
        %842 = vmatprep.subr.mxu0 0.0
        %843 = vmatpush2.xpose.msra.mxu0 0.0
        %844 = vmatprep.subr.mxu0 0.0
        %845 = vmatpush2.xpose.msra.mxu0 0.0
        %846 = vmatprep.subr.mxu0 0.0
        %847 = vmatpush2.xpose.msra.mxu0 0.0
        %848 = vmatprep.subr.mxu0 0.0
        %849 = vmatpush2.xpose.msra.mxu0 0.0
        %850 = vmatprep.subr.mxu0 0.0
        %851 = vmatpush2.xpose.msra.mxu0 0.0
        %852 = vmatprep.subr.mxu0 0.0
        %853 = vmatpush2.xpose.msra.mxu0 0.0
        %854 = vmatprep.mubr.f32.mxu0 0.0
        %855 = vmatmul.mubr.f32.gmra.mxu0 %v778
        %v856 = vpop.f32.mrf.mxu0
        %v857 = vadd.f32 0.0, %v856
        %v858 = vpop.f32.mrf.mxu0
        %859 = vmatprep.mubr.f32.mxu0 0.0
        %860 = vmatmul.mubr.f32.gmra.mxu0 %v780
        %v861 = vpop.f32.mrf.mxu0
        %v862 = vadd.f32 0.0, %v861
        %v863 = vpop.f32.mrf.mxu0
        %864 = vmatprep.mubr.f32.mxu0 0.0
        %865 = vmatmul.mubr.f32.gmra.mxu0 %v782
        %v866 = vpop.f32.mrf.mxu0
        %v867 = vadd.f32 0.0, %v866
        %v868 = vpop.f32.mrf.mxu0
        %869 = vdwg.mxu0
        %v870 = vsel %vm767, 1, 0
        %vm871 = vcmp.eq.s32.totalorder %v870, 1
        %v872 = vsel %vm871, %v857, -1e+30
        %v873 = vsel %vm871, %v862, -1e+30
        %v874 = vsel %vm871, %v867, -1e+30
        %vm875 = vcmask 195584
        %v876 = vsel %vm875, %v872, -inf
        %877 = vmax.xlane.f32.xlu0 %v876
        %v878 = vpop.xlane.xlu0 %877
        %v879 = vsel %vm875, %v873, -inf
        %880 = vmax.xlane.f32.xlu0 %v879
        %v881 = vpop.xlane.xlu0 %880
        %v882 = vsel %vm875, %v874, -inf
        %883 = vmax.xlane.f32.xlu0 %v882
        %v884 = vpop.xlane.xlu0 %883
        %v885 = vsub.f32 %v872, %v878
        %v886 = vsub.f32 %v873, %v881
        %v887 = vsub.f32 %v874, %v884
        %v888 = vmul.f32 %v885, 1.442695
        %v889 = vpow.pop %v888
        %v890 = vmul.f32 %v886, 1.442695
        %v891 = vpow.pop %v890
        %v892 = vmul.f32 %v887, 1.442695
        %v893 = vpow.pop %v892
        %v894 = vsel %vm875, %v889, 0.0
        %895 = vadd.xlane.f32.xlu0 %v894
        %v896 = vpop.xlane.xlu0 %895
        %v897 = vsel %vm875, %v891, 0.0
        %898 = vadd.xlane.f32.xlu0 %v897
        %v899 = vpop.xlane.xlu0 %898
        %v900 = vsel %vm875, %v893, 0.0
        %901 = vadd.xlane.f32.xlu0 %v900
        %v902 = vpop.xlane.xlu0 %901
        %v903 = vrcp.pop %v896
        %v904 = vrcp.pop %v899
        %v905 = vrcp.pop %v902
        %v906 = vmul.f32 %v889, %v903
        %v907 = vmul.f32 %v891, %v904
        %v908 = vmul.f32 %v893, %v905
        %909 = vrot.lane.b32.xlu0 %v752, 64
        %v910 = vpop.permute.xlu0 %909
        %911 = vrot.lane.b32.xlu0 %v755, 64
        %v912 = vpop.permute.xlu0 %911
        %913 = vrot.lane.b32.xlu0 %v760, 64
        %v914 = vpop.permute.xlu0 %913
        %v919 = vsel %vm875, %v906, 0
        %v922 = vsel %vm875, %v907, 0
        %v925 = vsel %vm875, %v908, 0
        %927 = vmatprep.subr.mxu0 0.0
        %928 = vmatpush1.msra.mxu0 0.0
        %929 = vmatprep.subr.mxu0 0.0
        %930 = vmatpush1.msra.mxu0 0.0
        %931 = vmatprep.subr.mxu0 0.0
        %932 = vmatpush1.msra.mxu0 0.0
        %933 = vmatprep.subr.mxu0 0.0
        %934 = vmatpush1.msra.mxu0 0.0
        %935 = vmatprep.subr.mxu0 0.0
        %936 = vmatpush1.msra.mxu0 0.0
        %937 = vmatprep.subr.mxu0 0.0
        %938 = vmatpush1.msra.mxu0 0.0
        %939 = vmatprep.subr.mxu0 0.0
        %940 = vmatpush1.msra.mxu0 0.0
        %941 = vmatprep.subr.mxu0 0.0
        %942 = vmatpush1.msra.mxu0 0.0
        %943 = vmatprep.subr.mxu0 0.0
        %944 = vmatpush1.msra.mxu0 0.0
        %945 = vmatprep.subr.mxu0 0.0
        %946 = vmatpush1.msra.mxu0 0.0
        %947 = vmatprep.subr.mxu0 0.0
        %948 = vmatpush1.msra.mxu0 0.0
        %949 = vmatprep.subr.mxu0 0.0
        %950 = vmatpush1.msra.mxu0 0.0
        %951 = vmatprep.subr.mxu0 0.0
        %952 = vmatpush1.msra.mxu0 0.0
        %953 = vmatprep.subr.mxu0 0.0
        %954 = vmatpush1.msra.mxu0 %v914
        %955 = vmatprep.subr.mxu0 0.0
        %956 = vmatpush1.msra.mxu0 %v912
        %957 = vmatprep.subr.mxu0 0.0
        %958 = vmatpush1.msra.mxu0 %v910
        %959 = vmatprep.subr.mxu0 0.0
        %960 = vmatpush2.msra.mxu0 0.0
        %961 = vmatprep.subr.mxu0 0.0
        %962 = vmatpush2.msra.mxu0 0.0
        %963 = vmatprep.subr.mxu0 0.0
        %964 = vmatpush2.msra.mxu0 0.0
        %965 = vmatprep.subr.mxu0 0.0
        %966 = vmatpush2.msra.mxu0 0.0
        %967 = vmatprep.subr.mxu0 0.0
        %968 = vmatpush2.msra.mxu0 0.0
        %969 = vmatprep.subr.mxu0 0.0
        %970 = vmatpush2.msra.mxu0 0.0
        %971 = vmatprep.subr.mxu0 0.0
        %972 = vmatpush2.msra.mxu0 0.0
        %973 = vmatprep.subr.mxu0 0.0
        %974 = vmatpush2.msra.mxu0 0.0
        %975 = vmatprep.subr.mxu0 0.0
        %976 = vmatpush2.msra.mxu0 0.0
        %977 = vmatprep.subr.mxu0 0.0
        %978 = vmatpush2.msra.mxu0 0.0
        %979 = vmatprep.subr.mxu0 0.0
        %980 = vmatpush2.msra.mxu0 0.0
        %981 = vmatprep.subr.mxu0 0.0
        %982 = vmatpush2.msra.mxu0 0.0
        %983 = vmatprep.subr.mxu0 0.0
        %984 = vmatpush2.msra.mxu0 0.0
        %985 = vmatprep.subr.mxu0 0.0
        %986 = vmatpush2.msra.mxu0 0.0
        %987 = vmatprep.subr.mxu0 0.0
        %988 = vmatpush2.msra.mxu0 0.0
        %989 = vmatprep.subr.mxu0 0.0
        %990 = vmatpush2.msra.mxu0 0.0
        %991 = vmatprep.mubr.f32.mxu0 0.0
        %992 = vmatmul.mubr.f32.gmra.mxu0 %v919
        %v993 = vpop.f32.mrf.mxu0
        %v994 = vadd.f32 0.0, %v993
        %v995 = vpop.f32.mrf.mxu0
        %996 = vmatprep.mubr.f32.mxu0 0.0
        %997 = vmatmul.mubr.f32.gmra.mxu0 %v922
        %v998 = vpop.f32.mrf.mxu0
        %v999 = vadd.f32 0.0, %v998
        %v1000 = vpop.f32.mrf.mxu0
        %1001 = vmatprep.mubr.f32.mxu0 0.0
        %1002 = vmatmul.mubr.f32.gmra.mxu0 %v925
        %v1003 = vpop.f32.mrf.mxu0
        %v1004 = vadd.f32 0.0, %v1003
        %v1005 = vpop.f32.mrf.mxu0
        %1006 = vdwg.mxu0
        %1007 = vrot.lane.b32.xlu0 %v752, 120
        %v1008 = vpop.permute.xlu0 %1007
        %1009 = vrot.lane.b32.xlu0 %v755, 120
        %v1010 = vpop.permute.xlu0 %1009
        %1011 = vrot.lane.b32.xlu0 %v760, 120
        %v1012 = vpop.permute.xlu0 %1011
        %1013 = vrot.lane.b32.xlu0 %v752, 88
        %v1014 = vpop.permute.xlu0 %1013
        %1015 = vrot.lane.b32.xlu0 %v755, 88
        %v1016 = vpop.permute.xlu0 %1015
        %1017 = vrot.lane.b32.xlu0 %v760, 88
        %v1018 = vpop.permute.xlu0 %1017
        %v1019 = vsel %vm777, %v1008, 0
        %v1021 = vsel %vm777, %v1010, 0
        %v1023 = vsel %vm777, %v1012, 0
        %v1025 = vsel %vm777, %v1014, 0
        %v1027 = vsel %vm777, %v1016, 0
        %v1029 = vsel %vm777, %v1018, 0
        %1031 = vmatprep.subr.mxu0 0.0
        %1032 = vmatpush1.xpose.msra.mxu0 0.0
        %1033 = vmatprep.subr.mxu0 0.0
        %1034 = vmatpush1.xpose.msra.mxu0 0.0
        %1035 = vmatprep.subr.mxu0 0.0
        %1036 = vmatpush1.xpose.msra.mxu0 0.0
        %1037 = vmatprep.subr.mxu0 0.0
        %1038 = vmatpush1.xpose.msra.mxu0 0.0
        %1039 = vmatprep.subr.mxu0 0.0
        %1040 = vmatpush1.xpose.msra.mxu0 0.0
        %1041 = vmatprep.subr.mxu0 0.0
        %1042 = vmatpush1.xpose.msra.mxu0 0.0
        %1043 = vmatprep.subr.mxu0 0.0
        %1044 = vmatpush1.xpose.msra.mxu0 0.0
        %1045 = vmatprep.subr.mxu0 0.0
        %1046 = vmatpush1.xpose.msra.mxu0 0.0
        %1047 = vmatprep.subr.mxu0 0.0
        %1048 = vmatpush1.xpose.msra.mxu0 0.0
        %1049 = vmatprep.subr.mxu0 0.0
        %1050 = vmatpush1.xpose.msra.mxu0 0.0
        %1051 = vmatprep.subr.mxu0 0.0
        %1052 = vmatpush1.xpose.msra.mxu0 0.0
        %1053 = vmatprep.subr.mxu0 0.0
        %1054 = vmatpush1.xpose.msra.mxu0 0.0
        %1055 = vmatprep.subr.mxu0 0.0
        %1056 = vmatpush1.xpose.msra.mxu0 0.0
        %1057 = vmatprep.subr.mxu0 0.0
        %1058 = vmatpush1.xpose.msra.mxu0 %v1029
        %1059 = vmatprep.subr.mxu0 0.0
        %1060 = vmatpush1.xpose.msra.mxu0 %v1027
        %1061 = vmatprep.subr.mxu0 0.0
        %1062 = vmatpush1.xpose.msra.mxu0 %v1025
        %1063 = vmatprep.subr.mxu0 0.0
        %1064 = vmatpush2.xpose.msra.mxu0 0.0
        %1065 = vmatprep.subr.mxu0 0.0
        %1066 = vmatpush2.xpose.msra.mxu0 0.0
        %1067 = vmatprep.subr.mxu0 0.0
        %1068 = vmatpush2.xpose.msra.mxu0 0.0
        %1069 = vmatprep.subr.mxu0 0.0
        %1070 = vmatpush2.xpose.msra.mxu0 0.0
        %1071 = vmatprep.subr.mxu0 0.0
        %1072 = vmatpush2.xpose.msra.mxu0 0.0
        %1073 = vmatprep.subr.mxu0 0.0
        %1074 = vmatpush2.xpose.msra.mxu0 0.0
        %1075 = vmatprep.subr.mxu0 0.0
        %1076 = vmatpush2.xpose.msra.mxu0 0.0
        %1077 = vmatprep.subr.mxu0 0.0
        %1078 = vmatpush2.xpose.msra.mxu0 0.0
        %1079 = vmatprep.subr.mxu0 0.0
        %1080 = vmatpush2.xpose.msra.mxu0 0.0
        %1081 = vmatprep.subr.mxu0 0.0
        %1082 = vmatpush2.xpose.msra.mxu0 0.0
        %1083 = vmatprep.subr.mxu0 0.0
        %1084 = vmatpush2.xpose.msra.mxu0 0.0
        %1085 = vmatprep.subr.mxu0 0.0
        %1086 = vmatpush2.xpose.msra.mxu0 0.0
        %1087 = vmatprep.subr.mxu0 0.0
        %1088 = vmatpush2.xpose.msra.mxu0 0.0
        %1089 = vmatprep.subr.mxu0 0.0
        %1090 = vmatpush2.xpose.msra.mxu0 0.0
        %1091 = vmatprep.subr.mxu0 0.0
        %1092 = vmatpush2.xpose.msra.mxu0 0.0
        %1093 = vmatprep.subr.mxu0 0.0
        %1094 = vmatpush2.xpose.msra.mxu0 0.0
        %1095 = vmatprep.mubr.f32.mxu0 0.0
        %1096 = vmatmul.mubr.f32.gmra.mxu0 %v1019
        %v1097 = vpop.f32.mrf.mxu0
        %v1098 = vadd.f32 0.0, %v1097
        %v1099 = vpop.f32.mrf.mxu0
        %1100 = vmatprep.mubr.f32.mxu0 0.0
        %1101 = vmatmul.mubr.f32.gmra.mxu0 %v1021
        %v1102 = vpop.f32.mrf.mxu0
        %v1103 = vadd.f32 0.0, %v1102
        %v1104 = vpop.f32.mrf.mxu0
        %1105 = vmatprep.mubr.f32.mxu0 0.0
        %1106 = vmatmul.mubr.f32.gmra.mxu0 %v1023
        %v1107 = vpop.f32.mrf.mxu0
        %v1108 = vadd.f32 0.0, %v1107
        %v1109 = vpop.f32.mrf.mxu0
        %1110 = vdwg.mxu0
        %v1111 = vsel %vm871, %v1098, -1e+30
        %v1112 = vsel %vm871, %v1103, -1e+30
        %v1113 = vsel %vm871, %v1108, -1e+30
        %v1114 = vsel %vm875, %v1111, -inf
        %1115 = vmax.xlane.f32.xlu0 %v1114
        %v1116 = vpop.xlane.xlu0 %1115
        %v1117 = vsel %vm875, %v1112, -inf
        %1118 = vmax.xlane.f32.xlu0 %v1117
        %v1119 = vpop.xlane.xlu0 %1118
        %v1120 = vsel %vm875, %v1113, -inf
        %1121 = vmax.xlane.f32.xlu0 %v1120
        %v1122 = vpop.xlane.xlu0 %1121
        %v1123 = vsub.f32 %v1111, %v1116
        %v1124 = vsub.f32 %v1112, %v1119
        %v1125 = vsub.f32 %v1113, %v1122
        %v1126 = vmul.f32 %v1123, 1.442695
        %v1127 = vpow.pop %v1126
        %v1128 = vmul.f32 %v1124, 1.442695
        %v1129 = vpow.pop %v1128
        %v1130 = vmul.f32 %v1125, 1.442695
        %v1131 = vpow.pop %v1130
        %v1132 = vsel %vm875, %v1127, 0.0
        %1133 = vadd.xlane.f32.xlu0 %v1132
        %v1134 = vpop.xlane.xlu0 %1133
        %v1135 = vsel %vm875, %v1129, 0.0
        %1136 = vadd.xlane.f32.xlu0 %v1135
        %v1137 = vpop.xlane.xlu0 %1136
        %v1138 = vsel %vm875, %v1131, 0.0
        %1139 = vadd.xlane.f32.xlu0 %v1138
        %v1140 = vpop.xlane.xlu0 %1139
        %v1141 = vrcp.pop %v1134
        %v1142 = vrcp.pop %v1137
        %v1143 = vrcp.pop %v1140
        %v1144 = vmul.f32 %v1127, %v1141
        %v1145 = vmul.f32 %v1129, %v1142
        %v1146 = vmul.f32 %v1131, %v1143
        %1147 = vrot.lane.b32.xlu0 %v752, 56
        %v1148 = vpop.permute.xlu0 %1147
        %1149 = vrot.lane.b32.xlu0 %v755, 56
        %v1150 = vpop.permute.xlu0 %1149
        %1151 = vrot.lane.b32.xlu0 %v760, 56
        %v1152 = vpop.permute.xlu0 %1151
        %v1157 = vsel %vm875, %v1144, 0
        %v1160 = vsel %vm875, %v1145, 0
        %v1163 = vsel %vm875, %v1146, 0
        %1165 = vmatprep.subr.mxu0 0.0
        %1166 = vmatpush1.msra.mxu0 0.0
        %1167 = vmatprep.subr.mxu0 0.0
        %1168 = vmatpush1.msra.mxu0 0.0
        %1169 = vmatprep.subr.mxu0 0.0
        %1170 = vmatpush1.msra.mxu0 0.0
        %1171 = vmatprep.subr.mxu0 0.0
        %1172 = vmatpush1.msra.mxu0 0.0
        %1173 = vmatprep.subr.mxu0 0.0
        %1174 = vmatpush1.msra.mxu0 0.0
        %1175 = vmatprep.subr.mxu0 0.0
        %1176 = vmatpush1.msra.mxu0 0.0
        %1177 = vmatprep.subr.mxu0 0.0
        %1178 = vmatpush1.msra.mxu0 0.0
        %1179 = vmatprep.subr.mxu0 0.0
        %1180 = vmatpush1.msra.mxu0 0.0
        %1181 = vmatprep.subr.mxu0 0.0
        %1182 = vmatpush1.msra.mxu0 0.0
        %1183 = vmatprep.subr.mxu0 0.0
        %1184 = vmatpush1.msra.mxu0 0.0
        %1185 = vmatprep.subr.mxu0 0.0
        %1186 = vmatpush1.msra.mxu0 0.0
        %1187 = vmatprep.subr.mxu0 0.0
        %1188 = vmatpush1.msra.mxu0 0.0
        %1189 = vmatprep.subr.mxu0 0.0
        %1190 = vmatpush1.msra.mxu0 0.0
        %1191 = vmatprep.subr.mxu0 0.0
        %1192 = vmatpush1.msra.mxu0 %v1152
        %1193 = vmatprep.subr.mxu0 0.0
        %1194 = vmatpush1.msra.mxu0 %v1150
        %1195 = vmatprep.subr.mxu0 0.0
        %1196 = vmatpush1.msra.mxu0 %v1148
        %1197 = vmatprep.subr.mxu0 0.0
        %1198 = vmatpush2.msra.mxu0 0.0
        %1199 = vmatprep.subr.mxu0 0.0
        %1200 = vmatpush2.msra.mxu0 0.0
        %1201 = vmatprep.subr.mxu0 0.0
        %1202 = vmatpush2.msra.mxu0 0.0
        %1203 = vmatprep.subr.mxu0 0.0
        %1204 = vmatpush2.msra.mxu0 0.0
        %1205 = vmatprep.subr.mxu0 0.0
        %1206 = vmatpush2.msra.mxu0 0.0
        %1207 = vmatprep.subr.mxu0 0.0
        %1208 = vmatpush2.msra.mxu0 0.0
        %1209 = vmatprep.subr.mxu0 0.0
        %1210 = vmatpush2.msra.mxu0 0.0
        %1211 = vmatprep.subr.mxu0 0.0
        %1212 = vmatpush2.msra.mxu0 0.0
        %1213 = vmatprep.subr.mxu0 0.0
        %1214 = vmatpush2.msra.mxu0 0.0
        %1215 = vmatprep.subr.mxu0 0.0
        %1216 = vmatpush2.msra.mxu0 0.0
        %1217 = vmatprep.subr.mxu0 0.0
        %1218 = vmatpush2.msra.mxu0 0.0
        %1219 = vmatprep.subr.mxu0 0.0
        %1220 = vmatpush2.msra.mxu0 0.0
        %1221 = vmatprep.subr.mxu0 0.0
        %1222 = vmatpush2.msra.mxu0 0.0
        %1223 = vmatprep.subr.mxu0 0.0
        %1224 = vmatpush2.msra.mxu0 0.0
        %1225 = vmatprep.subr.mxu0 0.0
        %1226 = vmatpush2.msra.mxu0 0.0
        %1227 = vmatprep.subr.mxu0 0.0
        %1228 = vmatpush2.msra.mxu0 0.0
        %1229 = vmatprep.mubr.f32.mxu0 0.0
        %1230 = vmatmul.mubr.f32.gmra.mxu0 %v1157
        %v1231 = vpop.f32.mrf.mxu0
        %v1232 = vadd.f32 0.0, %v1231
        %v1233 = vpop.f32.mrf.mxu0
        %1234 = vmatprep.mubr.f32.mxu0 0.0
        %1235 = vmatmul.mubr.f32.gmra.mxu0 %v1160
        %v1236 = vpop.f32.mrf.mxu0
        %v1237 = vadd.f32 0.0, %v1236
        %v1238 = vpop.f32.mrf.mxu0
        %1239 = vmatprep.mubr.f32.mxu0 0.0
        %1240 = vmatmul.mubr.f32.gmra.mxu0 %v1163
        %v1241 = vpop.f32.mrf.mxu0
        %v1242 = vadd.f32 0.0, %v1241
        %v1243 = vpop.f32.mrf.mxu0
        %1244 = vdwg.mxu0
        %1245 = vrot.lane.b32.xlu0 %v752, 112
        %v1246 = vpop.permute.xlu0 %1245
        %1247 = vrot.lane.b32.xlu0 %v755, 112
        %v1248 = vpop.permute.xlu0 %1247
        %1249 = vrot.lane.b32.xlu0 %v760, 112
        %v1250 = vpop.permute.xlu0 %1249
        %1251 = vrot.lane.b32.xlu0 %v752, 80
        %v1252 = vpop.permute.xlu0 %1251
        %1253 = vrot.lane.b32.xlu0 %v755, 80
        %v1254 = vpop.permute.xlu0 %1253
        %1255 = vrot.lane.b32.xlu0 %v760, 80
        %v1256 = vpop.permute.xlu0 %1255
        %v1257 = vsel %vm777, %v1246, 0
        %v1259 = vsel %vm777, %v1248, 0
        %v1261 = vsel %vm777, %v1250, 0
        %v1263 = vsel %vm777, %v1252, 0
        %v1265 = vsel %vm777, %v1254, 0
        %v1267 = vsel %vm777, %v1256, 0
        %1269 = vmatprep.subr.mxu0 0.0
        %1270 = vmatpush1.xpose.msra.mxu0 0.0
        %1271 = vmatprep.subr.mxu0 0.0
        %1272 = vmatpush1.xpose.msra.mxu0 0.0
        %1273 = vmatprep.subr.mxu0 0.0
        %1274 = vmatpush1.xpose.msra.mxu0 0.0
        %1275 = vmatprep.subr.mxu0 0.0
        %1276 = vmatpush1.xpose.msra.mxu0 0.0
        %1277 = vmatprep.subr.mxu0 0.0
        %1278 = vmatpush1.xpose.msra.mxu0 0.0
        %1279 = vmatprep.subr.mxu0 0.0
        %1280 = vmatpush1.xpose.msra.mxu0 0.0
        %1281 = vmatprep.subr.mxu0 0.0
        %1282 = vmatpush1.xpose.msra.mxu0 0.0
        %1283 = vmatprep.subr.mxu0 0.0
        %1284 = vmatpush1.xpose.msra.mxu0 0.0
        %1285 = vmatprep.subr.mxu0 0.0
        %1286 = vmatpush1.xpose.msra.mxu0 0.0
        %1287 = vmatprep.subr.mxu0 0.0
        %1288 = vmatpush1.xpose.msra.mxu0 0.0
        %1289 = vmatprep.subr.mxu0 0.0
        %1290 = vmatpush1.xpose.msra.mxu0 0.0
        %1291 = vmatprep.subr.mxu0 0.0
        %1292 = vmatpush1.xpose.msra.mxu0 0.0
        %1293 = vmatprep.subr.mxu0 0.0
        %1294 = vmatpush1.xpose.msra.mxu0 0.0
        %1295 = vmatprep.subr.mxu0 0.0
        %1296 = vmatpush1.xpose.msra.mxu0 %v1267
        %1297 = vmatprep.subr.mxu0 0.0
        %1298 = vmatpush1.xpose.msra.mxu0 %v1265
        %1299 = vmatprep.subr.mxu0 0.0
        %1300 = vmatpush1.xpose.msra.mxu0 %v1263
        %1301 = vmatprep.subr.mxu0 0.0
        %1302 = vmatpush2.xpose.msra.mxu0 0.0
        %1303 = vmatprep.subr.mxu0 0.0
        %1304 = vmatpush2.xpose.msra.mxu0 0.0
        %1305 = vmatprep.subr.mxu0 0.0
        %1306 = vmatpush2.xpose.msra.mxu0 0.0
        %1307 = vmatprep.subr.mxu0 0.0
        %1308 = vmatpush2.xpose.msra.mxu0 0.0
        %1309 = vmatprep.subr.mxu0 0.0
        %1310 = vmatpush2.xpose.msra.mxu0 0.0
        %1311 = vmatprep.subr.mxu0 0.0
        %1312 = vmatpush2.xpose.msra.mxu0 0.0
        %1313 = vmatprep.subr.mxu0 0.0
        %1314 = vmatpush2.xpose.msra.mxu0 0.0
        %1315 = vmatprep.subr.mxu0 0.0
        %1316 = vmatpush2.xpose.msra.mxu0 0.0
        %1317 = vmatprep.subr.mxu0 0.0
        %1318 = vmatpush2.xpose.msra.mxu0 0.0
        %1319 = vmatprep.subr.mxu0 0.0
        %1320 = vmatpush2.xpose.msra.mxu0 0.0
        %1321 = vmatprep.subr.mxu0 0.0
        %1322 = vmatpush2.xpose.msra.mxu0 0.0
        %1323 = vmatprep.subr.mxu0 0.0
        %1324 = vmatpush2.xpose.msra.mxu0 0.0
        %1325 = vmatprep.subr.mxu0 0.0
        %1326 = vmatpush2.xpose.msra.mxu0 0.0
        %1327 = vmatprep.subr.mxu0 0.0
        %1328 = vmatpush2.xpose.msra.mxu0 0.0
        %1329 = vmatprep.subr.mxu0 0.0
        %1330 = vmatpush2.xpose.msra.mxu0 0.0
        %1331 = vmatprep.subr.mxu0 0.0
        %1332 = vmatpush2.xpose.msra.mxu0 0.0
        %1333 = vmatprep.mubr.f32.mxu0 0.0
        %1334 = vmatmul.mubr.f32.gmra.mxu0 %v1257
        %v1335 = vpop.f32.mrf.mxu0
        %v1336 = vadd.f32 0.0, %v1335
        %v1337 = vpop.f32.mrf.mxu0
        %1338 = vmatprep.mubr.f32.mxu0 0.0
        %1339 = vmatmul.mubr.f32.gmra.mxu0 %v1259
        %v1340 = vpop.f32.mrf.mxu0
        %v1341 = vadd.f32 0.0, %v1340
        %v1342 = vpop.f32.mrf.mxu0
        %1343 = vmatprep.mubr.f32.mxu0 0.0
        %1344 = vmatmul.mubr.f32.gmra.mxu0 %v1261
        %v1345 = vpop.f32.mrf.mxu0
        %v1346 = vadd.f32 0.0, %v1345
        %v1347 = vpop.f32.mrf.mxu0
        %1348 = vdwg.mxu0
        %v1349 = vsel %vm871, %v1336, -1e+30
        %v1350 = vsel %vm871, %v1341, -1e+30
        %v1351 = vsel %vm871, %v1346, -1e+30
        %v1352 = vsel %vm875, %v1349, -inf
        %1353 = vmax.xlane.f32.xlu0 %v1352
        %v1354 = vpop.xlane.xlu0 %1353
        %v1355 = vsel %vm875, %v1350, -inf
        %1356 = vmax.xlane.f32.xlu0 %v1355
        %v1357 = vpop.xlane.xlu0 %1356
        %v1358 = vsel %vm875, %v1351, -inf
        %1359 = vmax.xlane.f32.xlu0 %v1358
        %v1360 = vpop.xlane.xlu0 %1359
        %v1361 = vsub.f32 %v1349, %v1354
        %v1362 = vsub.f32 %v1350, %v1357
        %v1363 = vsub.f32 %v1351, %v1360
        %v1364 = vmul.f32 %v1361, 1.442695
        %v1365 = vpow.pop %v1364
        %v1366 = vmul.f32 %v1362, 1.442695
        %v1367 = vpow.pop %v1366
        %v1368 = vmul.f32 %v1363, 1.442695
        %v1369 = vpow.pop %v1368
        %v1370 = vsel %vm875, %v1365, 0.0
        %1371 = vadd.xlane.f32.xlu0 %v1370
        %v1372 = vpop.xlane.xlu0 %1371
        %v1373 = vsel %vm875, %v1367, 0.0
        %1374 = vadd.xlane.f32.xlu0 %v1373
        %v1375 = vpop.xlane.xlu0 %1374
        %v1376 = vsel %vm875, %v1369, 0.0
        %1377 = vadd.xlane.f32.xlu0 %v1376
        %v1378 = vpop.xlane.xlu0 %1377
        %v1379 = vrcp.pop %v1372
        %v1380 = vrcp.pop %v1375
        %v1381 = vrcp.pop %v1378
        %v1382 = vmul.f32 %v1365, %v1379
        %v1383 = vmul.f32 %v1367, %v1380
        %v1384 = vmul.f32 %v1369, %v1381
        %1385 = vrot.lane.b32.xlu0 %v752, 48
        %v1386 = vpop.permute.xlu0 %1385
        %1387 = vrot.lane.b32.xlu0 %v755, 48
        %v1388 = vpop.permute.xlu0 %1387
        %1389 = vrot.lane.b32.xlu0 %v760, 48
        %v1390 = vpop.permute.xlu0 %1389
        %v1395 = vsel %vm875, %v1382, 0
        %v1398 = vsel %vm875, %v1383, 0
        %v1401 = vsel %vm875, %v1384, 0
        %1403 = vmatprep.subr.mxu0 0.0
        %1404 = vmatpush1.msra.mxu0 0.0
        %1405 = vmatprep.subr.mxu0 0.0
        %1406 = vmatpush1.msra.mxu0 0.0
        %1407 = vmatprep.subr.mxu0 0.0
        %1408 = vmatpush1.msra.mxu0 0.0
        %1409 = vmatprep.subr.mxu0 0.0
        %1410 = vmatpush1.msra.mxu0 0.0
        %1411 = vmatprep.subr.mxu0 0.0
        %1412 = vmatpush1.msra.mxu0 0.0
        %1413 = vmatprep.subr.mxu0 0.0
        %1414 = vmatpush1.msra.mxu0 0.0
        %1415 = vmatprep.subr.mxu0 0.0
        %1416 = vmatpush1.msra.mxu0 0.0
        %1417 = vmatprep.subr.mxu0 0.0
        %1418 = vmatpush1.msra.mxu0 0.0
        %1419 = vmatprep.subr.mxu0 0.0
        %1420 = vmatpush1.msra.mxu0 0.0
        %1421 = vmatprep.subr.mxu0 0.0
        %1422 = vmatpush1.msra.mxu0 0.0
        %1423 = vmatprep.subr.mxu0 0.0
        %1424 = vmatpush1.msra.mxu0 0.0
        %1425 = vmatprep.subr.mxu0 0.0
        %1426 = vmatpush1.msra.mxu0 0.0
        %1427 = vmatprep.subr.mxu0 0.0
        %1428 = vmatpush1.msra.mxu0 0.0
        %1429 = vmatprep.subr.mxu0 0.0
        %1430 = vmatpush1.msra.mxu0 %v1390
        %1431 = vmatprep.subr.mxu0 0.0
        %1432 = vmatpush1.msra.mxu0 %v1388
        %1433 = vmatprep.subr.mxu0 0.0
        %1434 = vmatpush1.msra.mxu0 %v1386
        %1435 = vmatprep.subr.mxu0 0.0
        %1436 = vmatpush2.msra.mxu0 0.0
        %1437 = vmatprep.subr.mxu0 0.0
        %1438 = vmatpush2.msra.mxu0 0.0
        %1439 = vmatprep.subr.mxu0 0.0
        %1440 = vmatpush2.msra.mxu0 0.0
        %1441 = vmatprep.subr.mxu0 0.0
        %1442 = vmatpush2.msra.mxu0 0.0
        %1443 = vmatprep.subr.mxu0 0.0
        %1444 = vmatpush2.msra.mxu0 0.0
        %1445 = vmatprep.subr.mxu0 0.0
        %1446 = vmatpush2.msra.mxu0 0.0
        %1447 = vmatprep.subr.mxu0 0.0
        %1448 = vmatpush2.msra.mxu0 0.0
        %1449 = vmatprep.subr.mxu0 0.0
        %1450 = vmatpush2.msra.mxu0 0.0
        %1451 = vmatprep.subr.mxu0 0.0
        %1452 = vmatpush2.msra.mxu0 0.0
        %1453 = vmatprep.subr.mxu0 0.0
        %1454 = vmatpush2.msra.mxu0 0.0
        %1455 = vmatprep.subr.mxu0 0.0
        %1456 = vmatpush2.msra.mxu0 0.0
        %1457 = vmatprep.subr.mxu0 0.0
        %1458 = vmatpush2.msra.mxu0 0.0
        %1459 = vmatprep.subr.mxu0 0.0
        %1460 = vmatpush2.msra.mxu0 0.0
        %1461 = vmatprep.subr.mxu0 0.0
        %1462 = vmatpush2.msra.mxu0 0.0
        %1463 = vmatprep.subr.mxu0 0.0
        %1464 = vmatpush2.msra.mxu0 0.0
        %1465 = vmatprep.subr.mxu0 0.0
        %1466 = vmatpush2.msra.mxu0 0.0
        %1467 = vmatprep.mubr.f32.mxu0 0.0
        %1468 = vmatmul.mubr.f32.gmra.mxu0 %v1395
        %v1469 = vpop.f32.mrf.mxu0
        %v1470 = vadd.f32 0.0, %v1469
        %v1471 = vpop.f32.mrf.mxu0
        %1472 = vmatprep.mubr.f32.mxu0 0.0
        %1473 = vmatmul.mubr.f32.gmra.mxu0 %v1398
        %v1474 = vpop.f32.mrf.mxu0
        %v1475 = vadd.f32 0.0, %v1474
        %v1476 = vpop.f32.mrf.mxu0
        %1477 = vmatprep.mubr.f32.mxu0 0.0
        %1478 = vmatmul.mubr.f32.gmra.mxu0 %v1401
        %v1479 = vpop.f32.mrf.mxu0
        %v1480 = vadd.f32 0.0, %v1479
        %v1481 = vpop.f32.mrf.mxu0
        %1482 = vdwg.mxu0
        %1483 = vrot.lane.b32.xlu0 %v752, 104
        %v1484 = vpop.permute.xlu0 %1483
        %1485 = vrot.lane.b32.xlu0 %v755, 104
        %v1486 = vpop.permute.xlu0 %1485
        %1487 = vrot.lane.b32.xlu0 %v760, 104
        %v1488 = vpop.permute.xlu0 %1487
        %1489 = vrot.lane.b32.xlu0 %v752, 72
        %v1490 = vpop.permute.xlu0 %1489
        %1491 = vrot.lane.b32.xlu0 %v755, 72
        %v1492 = vpop.permute.xlu0 %1491
        %1493 = vrot.lane.b32.xlu0 %v760, 72
        %v1494 = vpop.permute.xlu0 %1493
        %v1495 = vsel %vm777, %v1484, 0
        %v1497 = vsel %vm777, %v1486, 0
        %v1499 = vsel %vm777, %v1488, 0
        %v1501 = vsel %vm777, %v1490, 0
        %v1503 = vsel %vm777, %v1492, 0
        %v1505 = vsel %vm777, %v1494, 0
        %1507 = vmatprep.subr.mxu0 0.0
        %1508 = vmatpush1.xpose.msra.mxu0 0.0
        %1509 = vmatprep.subr.mxu0 0.0
        %1510 = vmatpush1.xpose.msra.mxu0 0.0
        %1511 = vmatprep.subr.mxu0 0.0
        %1512 = vmatpush1.xpose.msra.mxu0 0.0
        %1513 = vmatprep.subr.mxu0 0.0
        %1514 = vmatpush1.xpose.msra.mxu0 0.0
        %1515 = vmatprep.subr.mxu0 0.0
        %1516 = vmatpush1.xpose.msra.mxu0 0.0
        %1517 = vmatprep.subr.mxu0 0.0
        %1518 = vmatpush1.xpose.msra.mxu0 0.0
        %1519 = vmatprep.subr.mxu0 0.0
        %1520 = vmatpush1.xpose.msra.mxu0 0.0
        %1521 = vmatprep.subr.mxu0 0.0
        %1522 = vmatpush1.xpose.msra.mxu0 0.0
        %1523 = vmatprep.subr.mxu0 0.0
        %1524 = vmatpush1.xpose.msra.mxu0 0.0
        %1525 = vmatprep.subr.mxu0 0.0
        %1526 = vmatpush1.xpose.msra.mxu0 0.0
        %1527 = vmatprep.subr.mxu0 0.0
        %1528 = vmatpush1.xpose.msra.mxu0 0.0
        %1529 = vmatprep.subr.mxu0 0.0
        %1530 = vmatpush1.xpose.msra.mxu0 0.0
        %1531 = vmatprep.subr.mxu0 0.0
        %1532 = vmatpush1.xpose.msra.mxu0 0.0
        %1533 = vmatprep.subr.mxu0 0.0
        %1534 = vmatpush1.xpose.msra.mxu0 %v1505
        %1535 = vmatprep.subr.mxu0 0.0
        %1536 = vmatpush1.xpose.msra.mxu0 %v1503
        %1537 = vmatprep.subr.mxu0 0.0
        %1538 = vmatpush1.xpose.msra.mxu0 %v1501
        %1539 = vmatprep.subr.mxu0 0.0
        %1540 = vmatpush2.xpose.msra.mxu0 0.0
        %1541 = vmatprep.subr.mxu0 0.0
        %1542 = vmatpush2.xpose.msra.mxu0 0.0
        %1543 = vmatprep.subr.mxu0 0.0
        %1544 = vmatpush2.xpose.msra.mxu0 0.0
        %1545 = vmatprep.subr.mxu0 0.0
        %1546 = vmatpush2.xpose.msra.mxu0 0.0
        %1547 = vmatprep.subr.mxu0 0.0
        %1548 = vmatpush2.xpose.msra.mxu0 0.0
        %1549 = vmatprep.subr.mxu0 0.0
        %1550 = vmatpush2.xpose.msra.mxu0 0.0
        %1551 = vmatprep.subr.mxu0 0.0
        %1552 = vmatpush2.xpose.msra.mxu0 0.0
        %1553 = vmatprep.subr.mxu0 0.0
        %1554 = vmatpush2.xpose.msra.mxu0 0.0
        %1555 = vmatprep.subr.mxu0 0.0
        %1556 = vmatpush2.xpose.msra.mxu0 0.0
        %1557 = vmatprep.subr.mxu0 0.0
        %1558 = vmatpush2.xpose.msra.mxu0 0.0
        %1559 = vmatprep.subr.mxu0 0.0
        %1560 = vmatpush2.xpose.msra.mxu0 0.0
        %1561 = vmatprep.subr.mxu0 0.0
        %1562 = vmatpush2.xpose.msra.mxu0 0.0
        %1563 = vmatprep.subr.mxu0 0.0
        %1564 = vmatpush2.xpose.msra.mxu0 0.0
        %1565 = vmatprep.subr.mxu0 0.0
        %1566 = vmatpush2.xpose.msra.mxu0 0.0
        %1567 = vmatprep.subr.mxu0 0.0
        %1568 = vmatpush2.xpose.msra.mxu0 0.0
        %1569 = vmatprep.subr.mxu0 0.0
        %1570 = vmatpush2.xpose.msra.mxu0 0.0
        %1571 = vmatprep.mubr.f32.mxu0 0.0
        %1572 = vmatmul.mubr.f32.gmra.mxu0 %v1495
        %v1573 = vpop.f32.mrf.mxu0
        %v1574 = vadd.f32 0.0, %v1573
        %v1575 = vpop.f32.mrf.mxu0
        %1576 = vmatprep.mubr.f32.mxu0 0.0
        %1577 = vmatmul.mubr.f32.gmra.mxu0 %v1497
        %v1578 = vpop.f32.mrf.mxu0
        %v1579 = vadd.f32 0.0, %v1578
        %v1580 = vpop.f32.mrf.mxu0
        %1581 = vmatprep.mubr.f32.mxu0 0.0
        %1582 = vmatmul.mubr.f32.gmra.mxu0 %v1499
        %v1583 = vpop.f32.mrf.mxu0
        %v1584 = vadd.f32 0.0, %v1583
        %v1585 = vpop.f32.mrf.mxu0
        %1586 = vdwg.mxu0
        %v1587 = vsel %vm871, %v1574, -1e+30
        %v1588 = vsel %vm871, %v1579, -1e+30
        %v1589 = vsel %vm871, %v1584, -1e+30
        %v1590 = vsel %vm875, %v1587, -inf
        %1591 = vmax.xlane.f32.xlu0 %v1590
        %v1592 = vpop.xlane.xlu0 %1591
        %v1593 = vsel %vm875, %v1588, -inf
        %1594 = vmax.xlane.f32.xlu0 %v1593
        %v1595 = vpop.xlane.xlu0 %1594
        %v1596 = vsel %vm875, %v1589, -inf
        %1597 = vmax.xlane.f32.xlu0 %v1596
        %v1598 = vpop.xlane.xlu0 %1597
        %v1599 = vsub.f32 %v1587, %v1592
        %v1600 = vsub.f32 %v1588, %v1595
        %v1601 = vsub.f32 %v1589, %v1598
        %v1602 = vmul.f32 %v1599, 1.442695
        %v1603 = vpow.pop %v1602
        %v1604 = vmul.f32 %v1600, 1.442695
        %v1605 = vpow.pop %v1604
        %v1606 = vmul.f32 %v1601, 1.442695
        %v1607 = vpow.pop %v1606
        %v1608 = vsel %vm875, %v1603, 0.0
        %1609 = vadd.xlane.f32.xlu0 %v1608
        %v1610 = vpop.xlane.xlu0 %1609
        %v1611 = vsel %vm875, %v1605, 0.0
        %1612 = vadd.xlane.f32.xlu0 %v1611
        %v1613 = vpop.xlane.xlu0 %1612
        %v1614 = vsel %vm875, %v1607, 0.0
        %1615 = vadd.xlane.f32.xlu0 %v1614
        %v1616 = vpop.xlane.xlu0 %1615
        %v1617 = vrcp.pop %v1610
        %v1618 = vrcp.pop %v1613
        %v1619 = vrcp.pop %v1616
        %v1620 = vmul.f32 %v1603, %v1617
        %v1621 = vmul.f32 %v1605, %v1618
        %v1622 = vmul.f32 %v1607, %v1619
        %1623 = vrot.lane.b32.xlu0 %v752, 40
        %v1624 = vpop.permute.xlu0 %1623
        %1625 = vrot.lane.b32.xlu0 %v755, 40
        %v1626 = vpop.permute.xlu0 %1625
        %1627 = vrot.lane.b32.xlu0 %v760, 40
        %v1628 = vpop.permute.xlu0 %1627
        %v1633 = vsel %vm875, %v1620, 0
        %v1636 = vsel %vm875, %v1621, 0
        %v1639 = vsel %vm875, %v1622, 0
        %1641 = vmatprep.subr.mxu0 0.0
        %1642 = vmatpush1.msra.mxu0 0.0
        %1643 = vmatprep.subr.mxu0 0.0
        %1644 = vmatpush1.msra.mxu0 0.0
        %1645 = vmatprep.subr.mxu0 0.0
        %1646 = vmatpush1.msra.mxu0 0.0
        %1647 = vmatprep.subr.mxu0 0.0
        %1648 = vmatpush1.msra.mxu0 0.0
        %1649 = vmatprep.subr.mxu0 0.0
        %1650 = vmatpush1.msra.mxu0 0.0
        %1651 = vmatprep.subr.mxu0 0.0
        %1652 = vmatpush1.msra.mxu0 0.0
        %1653 = vmatprep.subr.mxu0 0.0
        %1654 = vmatpush1.msra.mxu0 0.0
        %1655 = vmatprep.subr.mxu0 0.0
        %1656 = vmatpush1.msra.mxu0 0.0
        %1657 = vmatprep.subr.mxu0 0.0
        %1658 = vmatpush1.msra.mxu0 0.0
        %1659 = vmatprep.subr.mxu0 0.0
        %1660 = vmatpush1.msra.mxu0 0.0
        %1661 = vmatprep.subr.mxu0 0.0
        %1662 = vmatpush1.msra.mxu0 0.0
        %1663 = vmatprep.subr.mxu0 0.0
        %1664 = vmatpush1.msra.mxu0 0.0
        %1665 = vmatprep.subr.mxu0 0.0
        %1666 = vmatpush1.msra.mxu0 0.0
        %1667 = vmatprep.subr.mxu0 0.0
        %1668 = vmatpush1.msra.mxu0 %v1628
        %1669 = vmatprep.subr.mxu0 0.0
        %1670 = vmatpush1.msra.mxu0 %v1626
        %1671 = vmatprep.subr.mxu0 0.0
        %1672 = vmatpush1.msra.mxu0 %v1624
        %1673 = vmatprep.subr.mxu0 0.0
        %1674 = vmatpush2.msra.mxu0 0.0
        %1675 = vmatprep.subr.mxu0 0.0
        %1676 = vmatpush2.msra.mxu0 0.0
        %1677 = vmatprep.subr.mxu0 0.0
        %1678 = vmatpush2.msra.mxu0 0.0
        %1679 = vmatprep.subr.mxu0 0.0
        %1680 = vmatpush2.msra.mxu0 0.0
        %1681 = vmatprep.subr.mxu0 0.0
        %1682 = vmatpush2.msra.mxu0 0.0
        %1683 = vmatprep.subr.mxu0 0.0
        %1684 = vmatpush2.msra.mxu0 0.0
        %1685 = vmatprep.subr.mxu0 0.0
        %1686 = vmatpush2.msra.mxu0 0.0
        %1687 = vmatprep.subr.mxu0 0.0
        %1688 = vmatpush2.msra.mxu0 0.0
        %1689 = vmatprep.subr.mxu0 0.0
        %1690 = vmatpush2.msra.mxu0 0.0
        %1691 = vmatprep.subr.mxu0 0.0
        %1692 = vmatpush2.msra.mxu0 0.0
        %1693 = vmatprep.subr.mxu0 0.0
        %1694 = vmatpush2.msra.mxu0 0.0
        %1695 = vmatprep.subr.mxu0 0.0
        %1696 = vmatpush2.msra.mxu0 0.0
        %1697 = vmatprep.subr.mxu0 0.0
        %1698 = vmatpush2.msra.mxu0 0.0
        %1699 = vmatprep.subr.mxu0 0.0
        %1700 = vmatpush2.msra.mxu0 0.0
        %1701 = vmatprep.subr.mxu0 0.0
        %1702 = vmatpush2.msra.mxu0 0.0
        %1703 = vmatprep.subr.mxu0 0.0
        %1704 = vmatpush2.msra.mxu0 0.0
        %1705 = vmatprep.mubr.f32.mxu0 0.0
        %1706 = vmatmul.mubr.f32.gmra.mxu0 %v1633
        %v1707 = vpop.f32.mrf.mxu0
        %v1708 = vadd.f32 0.0, %v1707
        %v1709 = vpop.f32.mrf.mxu0
        %1710 = vmatprep.mubr.f32.mxu0 0.0
        %1711 = vmatmul.mubr.f32.gmra.mxu0 %v1636
        %v1712 = vpop.f32.mrf.mxu0
        %v1713 = vadd.f32 0.0, %v1712
        %v1714 = vpop.f32.mrf.mxu0
        %1715 = vmatprep.mubr.f32.mxu0 0.0
        %1716 = vmatmul.mubr.f32.gmra.mxu0 %v1639
        %v1717 = vpop.f32.mrf.mxu0
        %v1718 = vadd.f32 0.0, %v1717
        %v1719 = vpop.f32.mrf.mxu0
        %1720 = vdwg.mxu0
        %1724 = vrot.lane.b32.xlu0 %v1232, 8
        %v1725 = vpop.permute.xlu0 %1724
        %1726 = vrot.lane.b32.xlu0 %v1237, 8
        %v1727 = vpop.permute.xlu0 %1726
        %1728 = vrot.lane.b32.xlu0 %v1242, 8
        %v1729 = vpop.permute.xlu0 %1728
        %1736 = vrot.lane.b32.xlu0 %v1470, 16
        %v1737 = vpop.permute.xlu0 %1736
        %1738 = vrot.lane.b32.xlu0 %v1475, 16
        %v1739 = vpop.permute.xlu0 %1738
        %1740 = vrot.lane.b32.xlu0 %v1480, 16
        %v1741 = vpop.permute.xlu0 %1740
        %1748 = vrot.lane.b32.xlu0 %v1708, 24
        %v1749 = vpop.permute.xlu0 %1748
        %1750 = vrot.lane.b32.xlu0 %v1713, 24
        %v1751 = vpop.permute.xlu0 %1750
        %1752 = vrot.lane.b32.xlu0 %v1718, 24
        %v1753 = vpop.permute.xlu0 %1752
        %v1757 = vsel %vm777, %v994, %v1725
        %v1758 = vsel %vm777, %v999, %v1727
        %v1759 = vsel %vm777, %v1004, %v1729
        %vm1760 = vcmask 130048
        %v1761 = vsel %vm1760, %v1757, %v1737
        %v1762 = vsel %vm1760, %v1758, %v1739
        %v1763 = vsel %vm1760, %v1759, %v1741
        %v1764 = vsel %vm875, %v1761, %v1749
        %v1765 = vsel %vm875, %v1762, %v1751
        %v1766 = vsel %vm875, %v1763, %v1753
        %v1767 = vpack.c.bf16 %v1765, %v1764
        %v1768 = vpack.c.bf16 %v1766, %v1766
        %v1773 = vunpack.c.l.b16 %v610
        %v1774 = vunpack.c.l.b16 %v611
        %v1775 = vunpack.c.l.b16 %v612
        %v1776 = vunpack.c.l.b16 %v613
        %v1777 = vpack.c.b16 %v1774, %v1773
        %v1778 = vpack.c.b16 %v1776, %v1775
        %v1782 = vsel %vm638, %v1767, 0
        %v1785 = vsel %vm638, %v1768, 0
        %1787 = vmatprep.subr.bf16.mxu0 0
        %1788 = vmatpush1.bf16.msra.mxu0 0
        %1789 = vmatprep.subr.bf16.mxu0 0
        %1790 = vmatpush1.bf16.msra.mxu0 0
        %1791 = vmatprep.subr.bf16.mxu0 0
        %1792 = vmatpush1.bf16.msra.mxu0 0
        %1793 = vmatprep.subr.bf16.mxu0 0
        %1794 = vmatpush1.bf16.msra.mxu0 0
        %1795 = vmatprep.subr.bf16.mxu0 0
        %1796 = vmatpush1.bf16.msra.mxu0 0
        %1797 = vmatprep.subr.bf16.mxu0 0
        %1798 = vmatpush1.bf16.msra.mxu0 0
        %1799 = vmatprep.subr.bf16.mxu0 0
        %1800 = vmatpush1.bf16.msra.mxu0 %v1778
        %1801 = vmatprep.subr.bf16.mxu0 0
        %1802 = vmatpush1.bf16.msra.mxu0 %v1777
        %1803 = vmatprep.subr.bf16.mxu0 0
        %1804 = vmatpush2.bf16.msra.mxu0 0
        %1805 = vmatprep.subr.bf16.mxu0 0
        %1806 = vmatpush2.bf16.msra.mxu0 0
        %1807 = vmatprep.subr.bf16.mxu0 0
        %1808 = vmatpush2.bf16.msra.mxu0 0
        %1809 = vmatprep.subr.bf16.mxu0 0
        %1810 = vmatpush2.bf16.msra.mxu0 0
        %1811 = vmatprep.subr.bf16.mxu0 0
        %1812 = vmatpush2.bf16.msra.mxu0 0
        %1813 = vmatprep.subr.bf16.mxu0 0
        %1814 = vmatpush2.bf16.msra.mxu0 0
        %1815 = vmatprep.subr.bf16.mxu0 0
        %1816 = vmatpush2.bf16.msra.mxu0 0
        %1817 = vmatprep.subr.bf16.mxu0 0
        %1818 = vmatpush2.bf16.msra.mxu0 0
        %1819 = vmatprep.mubr.bf16.mxu0 0
        %1820 = vmatmul.mubr.bf16.gmra.mxu0 %v1782
        %v1821 = vpop.f32.mrf.mxu0
        %v1822 = vadd.f32 0.0, %v1821
        %v1823 = vpop.f32.mrf.mxu0
        %v1824 = vpop.f32.mrf.mxu0
        %v1825 = vadd.f32 0.0, %v1824
        %v1826 = vpop.f32.mrf.mxu0
        %1827 = vmatprep.mubr.bf16.mxu0 0
        %1828 = vmatmul.mubr.bf16.gmra.mxu0 %v1785
        %v1829 = vpop.f32.mrf.mxu0
        %v1830 = vadd.f32 0.0, %v1829
        %v1831 = vpop.f32.mrf.mxu0
        %v1832 = vpop.f32.mrf.mxu0
        %v1833 = vpop.f32.mrf.mxu0
        %1834 = vdwg.mxu0
        %v1835 = vadd.f32 %v635, %v1822
        %v1836 = vadd.f32 %v636, %v1825
        %v1837 = vadd.f32 %v637, %v1830
        %v1838 = vlaneseq
        %v1839 = vshrl.u32 %v1838, 7
        %v1840 = vsub.s32 2, %v1839
        %v1841 = vrot.slane %v634, %v1840
        %v1842 = vadd.f32 %v1835, %v1841
        %v1843 = vadd.f32 %v1836, %v1841
        %v1844 = vadd.f32 %v1837, %v1841
        %v1845 = vsel %vm638, %v1842, 0.0
        %1846 = vadd.xlane.f32.xlu0 %v1845
        %v1847 = vpop.xlane.xlu0 %1846
        %v1848 = vsel %vm638, %v1843, 0.0
        %1849 = vadd.xlane.f32.xlu0 %v1848
        %v1850 = vpop.xlane.xlu0 %1849
        %v1851 = vsel %vm638, %v1844, 0.0
        %1852 = vadd.xlane.f32.xlu0 %v1851
        %v1853 = vpop.xlane.xlu0 %1852
        %v1854 = vmul.f32 %v1847, %v648
        %v1855 = vmul.f32 %v1850, %v648
        %v1856 = vmul.f32 %v1853, %v648
        %v1857 = vsub.f32 %v1842, %v1854
        %v1858 = vsub.f32 %v1843, %v1855
        %v1859 = vsub.f32 %v1844, %v1856
        %v1860 = vmul.f32 %v1857, %v1857
        %v1861 = vmul.f32 %v1858, %v1858
        %v1862 = vmul.f32 %v1859, %v1859
        %v1863 = vsel %vm638, %v1860, 0.0
        %1864 = vadd.xlane.f32.xlu0 %v1863
        %v1865 = vpop.xlane.xlu0 %1864
        %v1866 = vsel %vm638, %v1861, 0.0
        %1867 = vadd.xlane.f32.xlu0 %v1866
        %v1868 = vpop.xlane.xlu0 %1867
        %v1869 = vsel %vm638, %v1862, 0.0
        %1870 = vadd.xlane.f32.xlu0 %v1869
        %v1871 = vpop.xlane.xlu0 %1870
        %v1872 = vmul.f32 %v1865, %v648
        %v1873 = vmul.f32 %v1868, %v648
        %v1874 = vmul.f32 %v1871, %v648
        %v1875 = vadd.f32 %v1872, 1e-06
        %v1876 = vadd.f32 %v1873, 1e-06
        %v1877 = vadd.f32 %v1874, 1e-06
        %v1878 = vrsqrt.pop %v1875
        %v1879 = vrsqrt.pop %v1876
        %v1880 = vrsqrt.pop %v1877
        %v1881 = vmul.f32 %v1857, %v1878
        %v1882 = vmul.f32 %v1858, %v1879
        %v1883 = vmul.f32 %v1859, %v1880
        %v1884 = vlaneseq
        %v1885 = vshrl.u32 %v1884, 7
        %v1886 = vsub.s32 3, %v1885
        %v1887 = vrot.slane %v634, %v1886
        %v1888 = vmul.f32 %v1881, %v1887
        %v1889 = vmul.f32 %v1882, %v1887
        %v1890 = vmul.f32 %v1883, %v1887
        %v1891 = vlaneseq
        %v1892 = vshrl.u32 %v1891, 7
        %v1893 = vsub.s32 4, %v1892
        %v1894 = vrot.slane %v634, %v1893
        %v1895 = vadd.f32 %v1888, %v1894
        %v1896 = vadd.f32 %v1889, %v1894
        %v1897 = vadd.f32 %v1890, %v1894
        %v1898 = vpack.c.bf16 %v1896, %v1895
        %v1899 = vpack.c.bf16 %v1897, %v1897
        %v1900 = vlaneseq
        %v1901 = vshrl.u32 %v1900, 7
        %v1902 = vsub.s32 7, %v1901
        %v1903 = vrot.slane %v634, %v1902
        %v1908 = vunpack.c.l.b16 %v614
        %v1909 = vunpack.c.l.b16 %v615
        %v1910 = vunpack.c.l.b16 %v616
        %v1911 = vunpack.c.l.b16 %v617
        %v1912 = vpack.c.b16 %v1909, %v1908
        %v1913 = vpack.c.b16 %v1911, %v1910
        %v1917 = vsel %vm638, %v1898, 0
        %v1920 = vsel %vm638, %v1899, 0
        %1922 = vmatprep.subr.bf16.mxu0 0
        %1923 = vmatpush1.bf16.msra.mxu0 0
        %1924 = vmatprep.subr.bf16.mxu0 0
        %1925 = vmatpush1.bf16.msra.mxu0 0
        %1926 = vmatprep.subr.bf16.mxu0 0
        %1927 = vmatpush1.bf16.msra.mxu0 0
        %1928 = vmatprep.subr.bf16.mxu0 0
        %1929 = vmatpush1.bf16.msra.mxu0 0
        %1930 = vmatprep.subr.bf16.mxu0 0
        %1931 = vmatpush1.bf16.msra.mxu0 0
        %1932 = vmatprep.subr.bf16.mxu0 0
        %1933 = vmatpush1.bf16.msra.mxu0 0
        %1934 = vmatprep.subr.bf16.mxu0 0
        %1935 = vmatpush1.bf16.msra.mxu0 %v1913
        %1936 = vmatprep.subr.bf16.mxu0 0
        %1937 = vmatpush1.bf16.msra.mxu0 %v1912
        %1938 = vmatprep.subr.bf16.mxu0 0
        %1939 = vmatpush2.bf16.msra.mxu0 0
        %1940 = vmatprep.subr.bf16.mxu0 0
        %1941 = vmatpush2.bf16.msra.mxu0 0
        %1942 = vmatprep.subr.bf16.mxu0 0
        %1943 = vmatpush2.bf16.msra.mxu0 0
        %1944 = vmatprep.subr.bf16.mxu0 0
        %1945 = vmatpush2.bf16.msra.mxu0 0
        %1946 = vmatprep.subr.bf16.mxu0 0
        %1947 = vmatpush2.bf16.msra.mxu0 0
        %1948 = vmatprep.subr.bf16.mxu0 0
        %1949 = vmatpush2.bf16.msra.mxu0 0
        %1950 = vmatprep.subr.bf16.mxu0 0
        %1951 = vmatpush2.bf16.msra.mxu0 0
        %1952 = vmatprep.subr.bf16.mxu0 0
        %1953 = vmatpush2.bf16.msra.mxu0 0
        %1954 = vmatprep.mubr.bf16.mxu0 0
        %1955 = vmatmul.mubr.bf16.gmra.mxu0 %v1917
        %v1956 = vpop.f32.mrf.mxu0
        %v1957 = vadd.f32 %v1903, %v1956
        %v1958 = vpop.f32.mrf.mxu0
        %v1959 = vpop.f32.mrf.mxu0
        %v1960 = vadd.f32 %v1903, %v1959
        %v1961 = vpop.f32.mrf.mxu0
        %1962 = vmatprep.mubr.bf16.mxu0 0
        %1963 = vmatmul.mubr.bf16.gmra.mxu0 %v1920
        %v1964 = vpop.f32.mrf.mxu0
        %v1965 = vadd.f32 %v1903, %v1964
        %v1966 = vpop.f32.mrf.mxu0
        %v1967 = vpop.f32.mrf.mxu0
        %v1968 = vpop.f32.mrf.mxu0
        %1969 = vdwg.mxu0
        %v1970 = vmul.f32 %v1957, 0.5
        %v1971 = vmul.f32 %v1960, 0.5
        %v1972 = vmul.f32 %v1965, 0.5
        %v1973 = vmul.f32 %v1957, 0.70710677
        %v1974 = vmul.f32 %v1960, 0.70710677
        %v1975 = vmul.f32 %v1965, 0.70710677
        %v1976 = vand.u32 2147483647, %v1973
        %v1977 = vand.u32 2147483647, %v1974
        %v1978 = vand.u32 2147483647, %v1975
        %v1979 = vmul.f32 %v1976, 0.3275911
        %v1980 = vmul.f32 %v1977, 0.3275911
        %v1981 = vmul.f32 %v1978, 0.3275911
        %v1982 = vadd.f32 %v1979, 1.0
        %v1983 = vadd.f32 %v1980, 1.0
        %v1984 = vadd.f32 %v1981, 1.0
        %v1985 = vrcp.pop %v1982
        %v1986 = vrcp.pop %v1983
        %v1987 = vrcp.pop %v1984
        %v1988 = vmul.f32 %v1985, 1.0614054
        %v1989 = vmul.f32 %v1986, 1.0614054
        %v1990 = vmul.f32 %v1987, 1.0614054
        %v1991 = vadd.f32 %v1988, -1.4531521
        %v1992 = vadd.f32 %v1989, -1.4531521
        %v1993 = vadd.f32 %v1990, -1.4531521
        %v1994 = vmul.f32 %v1991, %v1985
        %v1995 = vmul.f32 %v1992, %v1986
        %v1996 = vmul.f32 %v1993, %v1987
        %v1997 = vadd.f32 %v1994, 1.4214138
        %v1998 = vadd.f32 %v1995, 1.4214138
        %v1999 = vadd.f32 %v1996, 1.4214138
        %v2000 = vmul.f32 %v1997, %v1985
        %v2001 = vmul.f32 %v1998, %v1986
        %v2002 = vmul.f32 %v1999, %v1987
        %v2003 = vadd.f32 %v2000, -0.28449672
        %v2004 = vadd.f32 %v2001, -0.28449672
        %v2005 = vadd.f32 %v2002, -0.28449672
        %v2006 = vmul.f32 %v2003, %v1985
        %v2007 = vmul.f32 %v2004, %v1986
        %v2008 = vmul.f32 %v2005, %v1987
        %v2009 = vadd.f32 %v2006, 0.2548296
        %v2010 = vadd.f32 %v2007, 0.2548296
        %v2011 = vadd.f32 %v2008, 0.2548296
        %v2012 = vmul.f32 %v2009, %v1985
        %v2013 = vmul.f32 %v2010, %v1986
        %v2014 = vmul.f32 %v2011, %v1987
        %v2015 = vsub.f32 0.0, %v1976
        %v2016 = vsub.f32 0.0, %v1977
        %v2017 = vsub.f32 0.0, %v1978
        %v2018 = vmul.f32 %v2015, %v1976
        %v2019 = vmul.f32 %v2016, %v1977
        %v2020 = vmul.f32 %v2017, %v1978
        %v2021 = vmul.f32 %v2018, 1.442695
        %v2022 = vpow.pop %v2021
        %v2023 = vmul.f32 %v2019, 1.442695
        %v2024 = vpow.pop %v2023
        %v2025 = vmul.f32 %v2020, 1.442695
        %v2026 = vpow.pop %v2025
        %v2027 = vmul.f32 %v2012, %v2022
        %v2028 = vmul.f32 %v2013, %v2024
        %v2029 = vmul.f32 %v2014, %v2026
        %v2030 = vsub.f32 1.0, %v2027
        %v2031 = vsub.f32 1.0, %v2028
        %v2032 = vsub.f32 1.0, %v2029
        %vm2033 = vcmp.ge.f32.partialorder %v1973, 0.0
        %vm2034 = vcmp.ge.f32.partialorder %v1974, 0.0
        %vm2035 = vcmp.ge.f32.partialorder %v1975, 0.0
        %v2036 = vsub.f32 0.0, %v2030
        %v2037 = vsub.f32 0.0, %v2031
        %v2038 = vsub.f32 0.0, %v2032
        %v2039 = vsel %vm2033, %v2030, %v2036
        %v2040 = vsel %vm2034, %v2031, %v2037
        %v2041 = vsel %vm2035, %v2032, %v2038
        %v2042 = vadd.f32 %v2039, 1.0
        %v2043 = vadd.f32 %v2040, 1.0
        %v2044 = vadd.f32 %v2041, 1.0
        %v2045 = vmul.f32 %v1970, %v2042
        %v2046 = vmul.f32 %v1971, %v2043
        %v2047 = vmul.f32 %v1972, %v2044
        %v2048 = vpack.c.bf16 %v2046, %v2045
        %v2049 = vpack.c.bf16 %v2047, %v2047
        %v2066 = vunpack.c.l.b16 %v618
        %v2067 = vunpack.c.l.b16 %v619
        %v2068 = vunpack.c.l.b16 %v620
        %v2069 = vunpack.c.l.b16 %v621
        %v2070 = vunpack.c.l.b16 %v622
        %v2071 = vunpack.c.l.b16 %v623
        %v2072 = vunpack.c.l.b16 %v624
        %v2073 = vunpack.c.l.b16 %v625
        %v2074 = vunpack.c.l.b16 %v626
        %v2075 = vunpack.c.l.b16 %v627
        %v2076 = vunpack.c.l.b16 %v628
        %v2077 = vunpack.c.l.b16 %v629
        %v2078 = vunpack.c.l.b16 %v630
        %v2079 = vunpack.c.l.b16 %v631
        %v2080 = vunpack.c.l.b16 %v632
        %v2081 = vunpack.c.l.b16 %v633
        %v2082 = vpack.c.b16 %v2067, %v2066
        %v2083 = vpack.c.b16 %v2069, %v2068
        %v2084 = vpack.c.b16 %v2071, %v2070
        %v2085 = vpack.c.b16 %v2073, %v2072
        %v2086 = vpack.c.b16 %v2075, %v2074
        %v2087 = vpack.c.b16 %v2077, %v2076
        %v2088 = vpack.c.b16 %v2079, %v2078
        %v2089 = vpack.c.b16 %v2081, %v2080
        %2098 = vmatprep.subr.bf16.mxu0 0
        %2099 = vmatpush1.bf16.msra.mxu0 %v2089
        %2100 = vmatprep.subr.bf16.mxu0 0
        %2101 = vmatpush1.bf16.msra.mxu0 %v2088
        %2102 = vmatprep.subr.bf16.mxu0 0
        %2103 = vmatpush1.bf16.msra.mxu0 %v2087
        %2104 = vmatprep.subr.bf16.mxu0 0
        %2105 = vmatpush1.bf16.msra.mxu0 %v2086
        %2106 = vmatprep.subr.bf16.mxu0 0
        %2107 = vmatpush1.bf16.msra.mxu0 %v2085
        %2108 = vmatprep.subr.bf16.mxu0 0
        %2109 = vmatpush1.bf16.msra.mxu0 %v2084
        %2110 = vmatprep.subr.bf16.mxu0 0
        %2111 = vmatpush1.bf16.msra.mxu0 %v2083
        %2112 = vmatprep.subr.bf16.mxu0 0
        %2113 = vmatpush1.bf16.msra.mxu0 %v2082
        %2114 = vmatprep.subr.bf16.mxu0 0
        %2115 = vmatpush2.bf16.msra.mxu0 0
        %2116 = vmatprep.subr.bf16.mxu0 0
        %2117 = vmatpush2.bf16.msra.mxu0 0
        %2118 = vmatprep.subr.bf16.mxu0 0
        %2119 = vmatpush2.bf16.msra.mxu0 0
        %2120 = vmatprep.subr.bf16.mxu0 0
        %2121 = vmatpush2.bf16.msra.mxu0 0
        %2122 = vmatprep.subr.bf16.mxu0 0
        %2123 = vmatpush2.bf16.msra.mxu0 0
        %2124 = vmatprep.subr.bf16.mxu0 0
        %2125 = vmatpush2.bf16.msra.mxu0 0
        %2126 = vmatprep.subr.bf16.mxu0 0
        %2127 = vmatpush2.bf16.msra.mxu0 0
        %2128 = vmatprep.subr.bf16.mxu0 0
        %2129 = vmatpush2.bf16.msra.mxu0 0
        %2130 = vmatprep.mubr.bf16.mxu0 0
        %2131 = vmatmul.mubr.bf16.gmra.mxu0 %v2048
        %v2132 = vpop.f32.mrf.mxu0
        %v2133 = vadd.f32 0.0, %v2132
        %v2134 = vpop.f32.mrf.mxu0
        %v2135 = vpop.f32.mrf.mxu0
        %v2136 = vadd.f32 0.0, %v2135
        %v2137 = vpop.f32.mrf.mxu0
        %2138 = vmatprep.mubr.bf16.mxu0 0
        %2139 = vmatmul.mubr.bf16.gmra.mxu0 %v2049
        %v2140 = vpop.f32.mrf.mxu0
        %v2141 = vadd.f32 0.0, %v2140
        %v2142 = vpop.f32.mrf.mxu0
        %v2143 = vpop.f32.mrf.mxu0
        %v2144 = vpop.f32.mrf.mxu0
        %2145 = vdwg.mxu0
        %v2146 = vadd.f32 %v1842, %v2133
        %v2147 = vadd.f32 %v1843, %v2136
        %v2148 = vadd.f32 %v1844, %v2141
        %v2149 = vlaneseq
        %v2150 = vshrl.u32 %v2149, 7
        %v2151 = vsub.s32 5, %v2150
        %v2152 = vrot.slane %v634, %v2151
        %v2153 = vadd.f32 %v2146, %v2152
        %v2154 = vadd.f32 %v2147, %v2152
        %v2155 = vadd.f32 %v2148, %v2152
        %2156 = vst.msk [vmem:[#allocation2] sm:$0xff] %vm638, %v2153
        %2157 = vst.msk [vmem:[#allocation2 + $0x8] sm:$0xff] %vm638, %v2154
        %2158 = vst.msk [vmem:[#allocation2 + $0x10] sm:$0xff] %vm638, %v2155
        %p2159 = scmp.eq.s32.totalorder %s30, 1
        // Predicated region
        $region69: #{ast_forward.1} parent=63 // pred_check
          %p2160 = pneg %p2159
        $region70: #{ast_forward.1} parent=63 // pred_check_branch
          %2162 = sbr.rel (%p2160) target = $region72
        $region71: #{ast_forward.1} parent=63 // pred_region
          %v2164 = vrot.slane %v2153, 1
          %v2166 = vadd.f32 %v2153, %v2164
          %v2167 = vmul.f32 %v2166, 0.5
          %v2168 = vld [vmem:[%s8] sm:$0x1]
          %v2169 = vld [vmem:[%s8 + $0x1] sm:$0x1]
          %vm2170 = vcmask 253952
          %v2171 = vsel %vm2170, %v2167, 0.0
          %2172 = vadd.xlane.f32.xlu0 %v2171
          %v2173 = vpop.xlane.xlu0 %2172
          %v2174 = vmul.f32 %v2173, %v648
          %v2175 = vsub.f32 %v2167, %v2174
          %v2176 = vmul.f32 %v2175, %v2175
          %v2177 = vsel %vm2170, %v2176, 0.0
          %2178 = vadd.xlane.f32.xlu0 %v2177
          %v2179 = vpop.xlane.xlu0 %2178
          %v2180 = vmul.f32 %v2179, %v648
          %v2181 = vadd.f32 %v2180, 1e-05
          %v2182 = vrsqrt.pop %v2181
          %v2183 = vmul.f32 %v2175, %v2182
          %v2184 = vmul.f32 %v2183, %v2168
          %v2185 = vadd.f32 %v2184, %v2169
          %v2186 = vld [vmem:[%s9] sm:$0xff]
          %v2187 = vld [vmem:[%s9 + $0x8] sm:$0xff]
          %v2188 = vld [vmem:[%s9 + $0x10] sm:$0xff]
          %v2189 = vld [vmem:[%s9 + $0x18] sm:$0xff]
          %v2190 = vld [vmem:[%s10] sm:$0x1]
          %v2192 = vsel %vm638, %v2185, 0
          %2194 = vmatprep.subr.mxu0 0.0
          %2195 = vmatpush1.msra.mxu0 0.0
          %2196 = vmatprep.subr.mxu0 0.0
          %2197 = vmatpush1.msra.mxu0 0.0
          %2198 = vmatprep.subr.mxu0 0.0
          %2199 = vmatpush1.msra.mxu0 0.0
          %2200 = vmatprep.subr.mxu0 0.0
          %2201 = vmatpush1.msra.mxu0 0.0
          %2202 = vmatprep.subr.mxu0 0.0
          %2203 = vmatpush1.msra.mxu0 0.0
          %2204 = vmatprep.subr.mxu0 0.0
          %2205 = vmatpush1.msra.mxu0 0.0
          %2206 = vmatprep.subr.mxu0 0.0
          %2207 = vmatpush1.msra.mxu0 0.0
          %2208 = vmatprep.subr.mxu0 0.0
          %2209 = vmatpush1.msra.mxu0 0.0
          %2210 = vmatprep.subr.mxu0 0.0
          %2211 = vmatpush1.msra.mxu0 0.0
          %2212 = vmatprep.subr.mxu0 0.0
          %2213 = vmatpush1.msra.mxu0 0.0
          %2214 = vmatprep.subr.mxu0 0.0
          %2215 = vmatpush1.msra.mxu0 0.0
          %2216 = vmatprep.subr.mxu0 0.0
          %2217 = vmatpush1.msra.mxu0 0.0
          %2218 = vmatprep.subr.mxu0 0.0
          %2219 = vmatpush1.msra.mxu0 %v2189
          %2220 = vmatprep.subr.mxu0 0.0
          %2221 = vmatpush1.msra.mxu0 %v2188
          %2222 = vmatprep.subr.mxu0 0.0
          %2223 = vmatpush1.msra.mxu0 %v2187
          %2224 = vmatprep.subr.mxu0 0.0
          %2225 = vmatpush1.msra.mxu0 %v2186
          %2226 = vmatprep.subr.mxu0 0.0
          %2227 = vmatpush2.msra.mxu0 0.0
          %2228 = vmatprep.subr.mxu0 0.0
          %2229 = vmatpush2.msra.mxu0 0.0
          %2230 = vmatprep.subr.mxu0 0.0
          %2231 = vmatpush2.msra.mxu0 0.0
          %2232 = vmatprep.subr.mxu0 0.0
          %2233 = vmatpush2.msra.mxu0 0.0
          %2234 = vmatprep.subr.mxu0 0.0
          %2235 = vmatpush2.msra.mxu0 0.0
          %2236 = vmatprep.subr.mxu0 0.0
          %2237 = vmatpush2.msra.mxu0 0.0
          %2238 = vmatprep.subr.mxu0 0.0
          %2239 = vmatpush2.msra.mxu0 0.0
          %2240 = vmatprep.subr.mxu0 0.0
          %2241 = vmatpush2.msra.mxu0 0.0
          %2242 = vmatprep.subr.mxu0 0.0
          %2243 = vmatpush2.msra.mxu0 0.0
          %2244 = vmatprep.subr.mxu0 0.0
          %2245 = vmatpush2.msra.mxu0 0.0
          %2246 = vmatprep.subr.mxu0 0.0
          %2247 = vmatpush2.msra.mxu0 0.0
          %2248 = vmatprep.subr.mxu0 0.0
          %2249 = vmatpush2.msra.mxu0 0.0
          %2250 = vmatprep.subr.mxu0 0.0
          %2251 = vmatpush2.msra.mxu0 0.0
          %2252 = vmatprep.subr.mxu0 0.0
          %2253 = vmatpush2.msra.mxu0 0.0
          %2254 = vmatprep.subr.mxu0 0.0
          %2255 = vmatpush2.msra.mxu0 0.0
          %2256 = vmatprep.subr.mxu0 0.0
          %2257 = vmatpush2.msra.mxu0 0.0
          %2258 = vmatprep.mubr.f32.mxu0 0.0
          %2259 = vmatmul.mubr.f32.gmra.mxu0 %v2192
          %v2260 = vpop.f32.mrf.mxu0
          %v2261 = vadd.f32 %v2190, %v2260
          %v2262 = vpop.f32.mrf.mxu0
          %2263 = vdwg.mxu0
          %2264 = vst [vmem:[%s463] sm:$0x1] %v2261
        $region72: #{ast_forward.1} parent=63 // pred_fallthru
          _
        %s2265 = sand.u32 %s306, 1
        %s2266 = scalar_lea.sflag [#allocation4], %s2265
        %s2267 = sand.u32 %s306, 1
        %s2268 = scalar_lea.vmem [#allocation3], %s2267
        // Predicated region
        $region73: #{ast_forward.1} parent=63 // pred_check
          %p2269 = pneg %p316
        $region74: #{ast_forward.1} parent=63 // pred_check_branch
          %2271 = sbr.rel (%p2269) target = $region76
        $region75: #{ast_forward.1} parent=63 // pred_region
          %s2273 = ssub.s32 16, 16
          %2274 = vsyncadd %s2266, %s2273
          %s2275 = smul.addr %s29, 16
          %s2276 = scalar_lea.hbm %s11, %s2275
          %s2278 = sshll.u32 %s2268, 4
          %s2279 = int_to_ptr.vmem [resolvable:$true] %s2278
          %2281 = dma.vmem_to_hbm [thread:$0]  %s2279, 16, %s2276, %s2266
        $region76: #{ast_forward.1} parent=63 // pred_fallthru
          _
      $region64: #{ast_forward.1} parent=5 // pred_fallthru
        _
      %p2282 = scmp.le.s32.totalorder 2, %s20
      // Predicated region
      $region77: #{ast_forward.1} parent=5 // pred_check
        %p2283 = pneg %p2282
      $region78: #{ast_forward.1} parent=5 // pred_check_branch
        %2285 = sbr.rel (%p2283) target = $region80
      $region79: #{ast_forward.1} parent=5 // pred_region
        %s2286 = ssub.s32 %s20, 2
        // Predicated region
        $region81: #{ast_forward.1} parent=79 // pred_check
          %p2287 = pneg %p322
        $region82: #{ast_forward.1} parent=79 // pred_check_branch
          %2289 = sbr.rel (%p2287) target = $region84
        $region83: #{ast_forward.1} parent=79 // pred_region
          %s2290 = sand.u32 %s307, 1
          %s2291 = scalar_lea.sflag [#allocation4], %s2290
          %s2292 = sand.u32 %s307, 1
          %s2293 = scalar_lea.vmem [#allocation3], %s2292
          %2294 = dma.done %s2291, 16
        $region84: #{ast_forward.1} parent=79 // pred_fallthru
          _
      $region80: #{ast_forward.1} parent=5 // pred_fallthru
        _
    $region6: #{ast_forward.1} parent=1 // loop_footer
      %s24 = sadd.s32 1, %s20
    $region7: #{ast_forward.1} parent=1 // loop_footer_branch
      %19 = sbr.rel target = $region3
    $region8: #{ast_forward.1} parent=1 // loop_exit
      _
    %2295 = vsyncpa [#allocation4], 1
    %s2296 = scalar_lea.sflag [#allocation4], 1
    %2297 = vsyncpa %s2296, 1

</llo_original>
